<compile_context>
chip_gen: v7x
topology: tpu7x:2x2x1
jax: 0.10.0
libtpu: 0.0.40
codegen_flags: <defaults>
</compile_context>

<pallas_src>
import functools

import jax
import jax.numpy as jnp
from jax.experimental import pallas as pl
from jax.experimental.pallas import tpu as pltpu


# -----------------------------------------------------------------------------
# Pallas kernel: one (batch, pixel-tile, point-chunk) grid step.
# -----------------------------------------------------------------------------
def _composite_kernel(feat_ref, idx_ref, dist_ref, out_ref, *, inv_r2, tile_points):
    """feat_ref:(C,TPTS) matmul-dtype, idx_ref:(1,K,TP) i32, dist_ref:(1,K,TP) f32,
    out_ref:(1,C,TP) f32 -- resident / accumulated across the point-chunk grid axis."""
    p_blk = pl.program_id(2)

    @pl.when(p_blk == 0)
    def _init():
        out_ref[...] = jnp.zeros_like(out_ref)

    idx = idx_ref[0]                                   # (K, TP) packed point idx, -1 = empty
    d2 = dist_ref[0].astype(jnp.float32)               # (K, TP) squared xy distances
    K, TP = idx.shape

    # weights = 1 - dists^2 / r^2  ("varying alpha", SynSin Sec. 3.2)
    alpha = 1.0 - d2 * inv_r2                          # (K, TP) f32

    # Fused weighted-scatter matrix W (tile_points, TP):
    #   W[p_local, pix] = sum_k [idx_k == p_global] * alpha_k * prod_{j<k}(1 - alpha_j)
    # NOTE: idx == -1 never matches point_iota (>= 0), so empty slots contribute
    # nothing to W without an explicit validity mask on the accumulation path;
    # validity only gates the cumulative-transmittance update below.
    base = p_blk * tile_points
    point_iota = jax.lax.broadcasted_iota(jnp.int32, (tile_points, TP), 0) + base

    w_acc = jnp.zeros((tile_points, TP), jnp.float32)
    cum = jnp.ones((1, TP), jnp.float32)
    # Static K-loop: with the fused-W structure, live state is just (w_acc, cum),
    # so vreg pressure stays flat even though the loop is unrolled in Python.
    for k in range(K):
        pidx = idx[k:k + 1, :]                         # (1, TP)
        a = alpha[k:k + 1, :]                          # (1, TP)
        w_acc = w_acc + jnp.where(point_iota == pidx, a * cum, 0.0)
        cum = jnp.where(pidx >= 0, cum * (1.0 - a), cum)

    # ONE MXU matmul per grid step: (C, TPTS) @ (TPTS, TP) -> (C, TP), f32 accumulate.
    # (N = TP = 256-multiple fills the MXU width; bf16 operands on v6e/v7x.)
    feats = feat_ref[...]
    partial = jnp.dot(feats, w_acc.astype(feats.dtype),
                      preferred_element_type=jnp.float32)
    out_ref[0] = out_ref[0] + partial


def alpha_composite_pallas(idx_nk, dists_nk, features_cp, radius, *,
                           tile_pixels=512, tile_points=512,
                           matmul_dtype=jnp.bfloat16):
    """idx_nk:(N,K,HW) i32, dists_nk:(N,K,HW) f32, features_cp:(C,P) f32 -> (N,C,HW) f32."""
    N, K, HW = idx_nk.shape
    C, P = features_cp.shape

    # Pad the packed point dim to a lane multiple (padded columns are never indexed).
    pad = (-P) % 128
    if pad:
        features_cp = jnp.pad(features_cp, ((0, 0), (0, pad)))
        P += pad

    tile_pixels = min(tile_pixels, HW)
    tile_points = min(tile_points, P)
    assert HW % tile_pixels == 0 and tile_pixels % 128 == 0, "HW must tile by 128-lane blocks"
    assert P % tile_points == 0 and tile_points % 128 == 0

    feats = features_cp.astype(matmul_dtype)
    itemsize = jnp.dtype(matmul_dtype).itemsize

    grid = (N, HW // tile_pixels, P // tile_points)    # reduction (point-chunk) axis last

    # Advisory cost hint so XLA can schedule around the kernel.
    flops = int(2 * N * C * P * HW + 3 * N * K * P * HW)
    bytes_accessed = int(N * K * HW * 8                         # idx + dists
                         + (HW // tile_pixels) * N * C * P * itemsize  # features per pixel tile
                         + N * C * HW * 4)                      # output
    cost = pl.CostEstimate(flops=flops, transcendentals=0, bytes_accessed=bytes_accessed)

    # VMEM budget: double-buffered blocks + fused-W intermediates, with margin,
    # capped below v7x's 64 MiB physical VMEM.
    est = (2 * 2 * K * tile_pixels * 4            # idx + dists blocks (double-buffered)
           + 2 * C * tile_points * itemsize       # feature chunk (double-buffered)
           + 2 * C * tile_pixels * 4              # output block
           + 4 * tile_points * tile_pixels * 4    # W accumulator + temporaries
           + 2 * K * tile_pixels * 4)             # alpha, masks
    vmem_limit = int(min(max(4 * est, 16 * 2**20), 48 * 2**20))

    return pl.pallas_call(
        functools.partial(_composite_kernel,
                          inv_r2=float(1.0 / (radius * radius)),
                          tile_points=tile_points),
        out_shape=jax.ShapeDtypeStruct((N, C, HW), jnp.float32),
        grid=grid,
        in_specs=[
            pl.BlockSpec((C, tile_points), lambda n, t, p: (0, p)),        # feature chunk
            pl.BlockSpec((1, K, tile_pixels), lambda n, t, p: (n, 0, t)),  # idx
            pl.BlockSpec((1, K, tile_pixels), lambda n, t, p: (n, 0, t)),  # dists
        ],
        out_specs=pl.BlockSpec((1, C, tile_pixels), lambda n, t, p: (n, 0, t)),
        compiler_params=pltpu.CompilerParams(
            dimension_semantics=("parallel", "parallel", "arbitrary"),
            vmem_limit_bytes=vmem_limit),
        cost_estimate=cost,
    )(feats, idx_nk, dists_nk)


# -----------------------------------------------------------------------------
# Plain-JAX glue: simple point rasterizer (sub-module of the renderer).
# TODO(synk): tile/fuse the rasterizer (per-pixel d2 + top-K) -- at real
# resolutions its (N, HW, P) distance tensor dominates end-to-end HBM traffic.
# -----------------------------------------------------------------------------
def simple_rasterize(points_ndc, H, W, K, radius):
    """points_ndc:(N,P,3). Returns idx/zbuf/dists each (N,H,W,K); idx is packed index, -1 empty."""
    N, P, _ = points_ndc.shape
    ys = 1.0 - (2.0 * jnp.arange(H) + 1.0) / H
    xs = 1.0 - (2.0 * jnp.arange(W) + 1.0) / W
    py, px = jnp.meshgrid(ys, xs, indexing="ij")
    pix = jnp.stack([px, py], -1).reshape(-1, 2)                     # (HW, 2)

    xy = points_ndc[:, :, :2]                                        # (N,P,2)
    z = points_ndc[:, :, 2]                                          # (N,P)
    d2 = jnp.sum((pix[None, :, None, :] - xy[:, None, :, :]) ** 2, -1)  # (N,HW,P)
    inside = (d2 < radius * radius) & (z[:, None, :] > 0.0)
    z_masked = jnp.where(inside, z[:, None, :], jnp.inf)

    neg_z, sel = jax.lax.top_k(-z_masked, K)                         # nearest-by-depth, front first
    sel_z = -neg_z
    sel_valid = jnp.isfinite(sel_z)
    sel_d2 = jnp.take_along_axis(d2, sel, axis=2)

    packed = sel + (jnp.arange(N)[:, None, None] * P)                # packed point index
    idx = jnp.where(sel_valid, packed, -1).astype(jnp.int32)         # int32 suffices (vs .long())
    zbuf = jnp.where(sel_valid, sel_z, -1.0).astype(jnp.float32)
    dists = jnp.where(sel_valid, sel_d2, -1.0).astype(jnp.float32)
    return (idx.reshape(N, H, W, K),
            zbuf.reshape(N, H, W, K),
            dists.reshape(N, H, W, K))


# -----------------------------------------------------------------------------
# The renderer forward (wrapper mirroring CustomPointsRenderer.forward).
# -----------------------------------------------------------------------------
def custom_points_renderer_forward(points_ndc, features_packed, *, H, W, K, radius,
                                   min_depth=0.01, matmul_dtype=jnp.bfloat16):
    # NOTE: min_depth is stored by the module but unused in its forward (kept for parity).
    del min_depth
    idx, zbuf, dists = simple_rasterize(points_ndc, H, W, K, radius)   # fragments

    N = points_ndc.shape[0]
    HW = H * W
    # permute (0,3,1,2) and flatten spatial -> (N, K, HW)
    idx_nk = jnp.transpose(idx, (0, 3, 1, 2)).reshape(N, K, HW)
    dists_nk = jnp.transpose(dists, (0, 3, 1, 2)).reshape(N, K, HW)
    features_cp = jnp.transpose(features_packed, (1, 0))              # (C, P_packed)

    images_flat = alpha_composite_pallas(idx_nk, dists_nk, features_cp, radius,
                                         matmul_dtype=matmul_dtype)   # (N,C,HW)
    images = jnp.transpose(images_flat.reshape(N, -1, H, W), (0, 2, 3, 1))  # (N,H,W,C)
    return images, zbuf


# -----------------------------------------------------------------------------
# Pure-JAX reference for the compositing hot path (correctness check).
# -----------------------------------------------------------------------------
def _ref_composite(idx_nk, dists_nk, features_cp, radius):
    N, K, HW = idx_nk.shape
    C = features_cp.shape[0]
    alpha = 1.0 - dists_nk / (radius * radius)
    out = jnp.zeros((N, C, HW), jnp.float32)
    cum = jnp.ones((N, 1, HW), jnp.float32)
    for k in range(K):
        pidx = idx_nk[:, k, :]
        a = alpha[:, k, :]
        valid = pidx >= 0
        f = jnp.transpose(features_cp[:, jnp.maximum(pidx, 0)], (1, 0, 2))  # (N,C,HW)
        w = jnp.where(valid, a, 0.0)[:, None, :] * cum
        out = out + f * w
        cum = jnp.where(valid[:, None, :], cum * (1.0 - a)[:, None, :], cum)
    return out


if __name__ == "__main__":
    key = jax.random.PRNGKey(0)
    N, P, C = 2, 64, 4          # batch, points per cloud, feature channels
    H = W = 16
    K = 8                       # points per pixel kept by the rasterizer
    radius = 0.2

    k1, k2, k3 = jax.random.split(key, 3)
    xy = jax.random.uniform(k1, (N, P, 2), minval=-1.0, maxval=1.0)
    z = jax.random.uniform(k2, (N, P, 1), minval=0.5, maxval=2.0)
    points_ndc = jnp.concatenate([xy, z], axis=-1).astype(jnp.float32)       # (N,P,3)
    features_packed = jax.random.uniform(k3, (N * P, C), dtype=jnp.float32)  # packed features

    images, zbuf = custom_points_renderer_forward(
        points_ndc, features_packed, H=H, W=W, K=K, radius=radius)
    images = jax.block_until_ready(images)
    zbuf = jax.block_until_ready(zbuf)

    # Reference for the compositing hot path.
    idx, _, dists = simple_rasterize(points_ndc, H, W, K, radius)
    idx_nk = jnp.transpose(idx, (0, 3, 1, 2)).reshape(N, K, H * W)
    dists_nk = jnp.transpose(dists, (0, 3, 1, 2)).reshape(N, K, H * W)
    features_cp = jnp.transpose(features_packed, (1, 0))
    ref = _ref_composite(idx_nk, dists_nk, features_cp, radius)
    ref_images = jnp.transpose(ref.reshape(N, C, H, W), (0, 2, 3, 1))

    # 1) Exact-semantics check of the fused kernel with f32 matmul operands.
    out_f32 = jax.block_until_ready(
        alpha_composite_pallas(idx_nk, dists_nk, features_cp, radius,
                               matmul_dtype=jnp.float32))
    assert jnp.allclose(out_f32, ref, rtol=1e-4, atol=1e-4)

    # 2) Default (bf16 MXU operands) path: looser tolerance for bf16 rounding.
    assert images.shape == (N, H, W, C)
    assert zbuf.shape == (N, H, W, K)
    assert jnp.allclose(images, ref_images, rtol=2e-2, atol=2e-2)

    print("KERNEL_OK")
</pallas_src>

<mosaic_0001>
module attributes {stable_mosaic.version = 11 : i64} {
  func.func @_composite_kernel(%arg0: i32, %arg1: i32, %arg2: i32, %arg3: memref<4x128xbf16, #tpu.memory_space<vmem>>, %arg4: memref<1x8x256xi32, #tpu.memory_space<vmem>>, %arg5: memref<1x8x256xf32, #tpu.memory_space<vmem>>, %arg6: memref<1x4x256xf32, #tpu.memory_space<vmem>>) attributes {dimension_semantics = [#tpu.dimension_semantics<parallel>, #tpu.dimension_semantics<parallel>, #tpu.dimension_semantics<arbitrary>], iteration_bounds = array<i64: 2, 1, 1>, scalar_prefetch = 0 : i64, scratch_operands = 0 : i64, tpu.core_type = #tpu.core_type<tc>, window_params = [{transform_indices = @transform_0, window_bounds = array<i64: 4, 128>}, {transform_indices = @transform_1, window_bounds = array<i64: 1, 8, 256>}, {transform_indices = @transform_2, window_bounds = array<i64: 1, 8, 256>}, {transform_indices = @transform_3, window_bounds = array<i64: 1, 4, 256>}]} {
    %c0_i32 = arith.constant 0 : i32
    %0 = arith.cmpi eq, %arg2, %c0_i32 : i32
    %1 = arith.extui %0 : i1 to i32
    %c0_i32_0 = arith.constant 0 : i32
    %2 = arith.cmpi ne, %1, %c0_i32_0 : i32
    scf.if %2 {
      %cst_40 = arith.constant 0.000000e+00 : f32
      %148 = vector.broadcast %cst_40 : f32 to vector<1x4x256xf32>
      %c0_41 = arith.constant 0 : index
      %c0_42 = arith.constant 0 : index
      %c0_43 = arith.constant 0 : index
      %149 = vector.load %arg6[%c0_41, %c0_42, %c0_43] : memref<1x4x256xf32, #tpu.memory_space<vmem>>, vector<1x4x256xf32>
      tpu.vector_store %arg6[%c0_41, %c0_42, %c0_43], %148 {strides = array<i32>} : memref<1x4x256xf32, #tpu.memory_space<vmem>>, vector<1x4x256xf32>,
    } else {
    }
    %c0 = arith.constant 0 : index
    %c0_1 = arith.constant 0 : index
    %c0_2 = arith.constant 0 : index
    %3 = vector.load %arg4[%c0, %c0_1, %c0_2] : memref<1x8x256xi32, #tpu.memory_space<vmem>>, vector<1x8x256xi32>
    %4 = vector.shape_cast %3 : vector<1x8x256xi32> to vector<8x256xi32>
    %c0_3 = arith.constant 0 : index
    %c0_4 = arith.constant 0 : index
    %c0_5 = arith.constant 0 : index
    %5 = vector.load %arg5[%c0_3, %c0_4, %c0_5] : memref<1x8x256xf32, #tpu.memory_space<vmem>>, vector<1x8x256xf32>
    %6 = vector.shape_cast %5 : vector<1x8x256xf32> to vector<8x256xf32>
    %cst = arith.constant 2.500000e+01 : f32
    %7 = vector.broadcast %cst : f32 to vector<8x256xf32>
    %8 = arith.mulf %6, %7 : vector<8x256xf32>
    %cst_6 = arith.constant 1.000000e+00 : f32
    %9 = vector.broadcast %cst_6 : f32 to vector<8x256xf32>
    %10 = arith.subf %9, %8 : vector<8x256xf32>
    %c128_i32 = arith.constant 128 : i32
    %11 = arith.muli %arg2, %c128_i32 : i32
    %12 = tpu.iota {dimensions = array<i32: 0>} : vector<128x256xi32>
    %13 = vector.broadcast %11 : i32 to vector<128x256xi32>
    %14 = arith.addi %12, %13 : vector<128x256xi32>
    %cst_7 = arith.constant 0.000000e+00 : f32
    %15 = vector.broadcast %cst_7 : f32 to vector<128x256xf32>
    %cst_8 = arith.constant 1.000000e+00 : f32
    %16 = vector.broadcast %cst_8 : f32 to vector<1x256xf32>
    %17 = vector.extract_strided_slice %4 {offsets = [0, 0], sizes = [1, 256], strides = [1, 1]} : vector<8x256xi32> to vector<1x256xi32>
    %18 = vector.extract_strided_slice %10 {offsets = [0, 0], sizes = [1, 256], strides = [1, 1]} : vector<8x256xf32> to vector<1x256xf32>
    %19 = vector.broadcast %17 : vector<1x256xi32> to vector<128x256xi32>
    %20 = arith.cmpi eq, %14, %19 : vector<128x256xi32>
    %21 = arith.mulf %18, %16 : vector<1x256xf32>
    %cst_9 = arith.constant 0.000000e+00 : f32
    %22 = vector.shape_cast %21 : vector<1x256xf32> to vector<1x256xf32>
    %23 = vector.broadcast %22 : vector<1x256xf32> to vector<128x256xf32>
    %24 = vector.broadcast %cst_9 : f32 to vector<128x256xf32>
    %25 = arith.select %20, %23, %24 : vector<128x256xi1>, vector<128x256xf32>
    %26 = arith.addf %15, %25 : vector<128x256xf32>
    %c0_i32_10 = arith.constant 0 : i32
    %27 = vector.broadcast %c0_i32_10 : i32 to vector<1x256xi32>
    %28 = arith.cmpi sge, %17, %27 : vector<1x256xi32>
    %cst_11 = arith.constant 1.000000e+00 : f32
    %29 = vector.broadcast %cst_11 : f32 to vector<1x256xf32>
    %30 = arith.subf %29, %18 : vector<1x256xf32>
    %31 = arith.mulf %16, %30 : vector<1x256xf32>
    %32 = arith.select %28, %31, %16 : vector<1x256xi1>, vector<1x256xf32>
    %33 = vector.extract_strided_slice %4 {offsets = [1, 0], sizes = [1, 256], strides = [1, 1]} : vector<8x256xi32> to vector<1x256xi32>
    %34 = vector.extract_strided_slice %10 {offsets = [1, 0], sizes = [1, 256], strides = [1, 1]} : vector<8x256xf32> to vector<1x256xf32>
    %35 = vector.broadcast %33 : vector<1x256xi32> to vector<128x256xi32>
    %36 = arith.cmpi eq, %14, %35 : vector<128x256xi32>
    %37 = arith.mulf %34, %32 : vector<1x256xf32>
    %cst_12 = arith.constant 0.000000e+00 : f32
    %38 = vector.shape_cast %37 : vector<1x256xf32> to vector<1x256xf32>
    %39 = vector.broadcast %38 : vector<1x256xf32> to vector<128x256xf32>
    %40 = vector.broadcast %cst_12 : f32 to vector<128x256xf32>
    %41 = arith.select %36, %39, %40 : vector<128x256xi1>, vector<128x256xf32>
    %42 = arith.addf %26, %41 : vector<128x256xf32>
    %c0_i32_13 = arith.constant 0 : i32
    %43 = vector.broadcast %c0_i32_13 : i32 to vector<1x256xi32>
    %44 = arith.cmpi sge, %33, %43 : vector<1x256xi32>
    %cst_14 = arith.constant 1.000000e+00 : f32
    %45 = vector.broadcast %cst_14 : f32 to vector<1x256xf32>
    %46 = arith.subf %45, %34 : vector<1x256xf32>
    %47 = arith.mulf %32, %46 : vector<1x256xf32>
    %48 = arith.select %44, %47, %32 : vector<1x256xi1>, vector<1x256xf32>
    %49 = vector.extract_strided_slice %4 {offsets = [2, 0], sizes = [1, 256], strides = [1, 1]} : vector<8x256xi32> to vector<1x256xi32>
    %50 = vector.extract_strided_slice %10 {offsets = [2, 0], sizes = [1, 256], strides = [1, 1]} : vector<8x256xf32> to vector<1x256xf32>
    %51 = vector.broadcast %49 : vector<1x256xi32> to vector<128x256xi32>
    %52 = arith.cmpi eq, %14, %51 : vector<128x256xi32>
    %53 = arith.mulf %50, %48 : vector<1x256xf32>
    %cst_15 = arith.constant 0.000000e+00 : f32
    %54 = vector.shape_cast %53 : vector<1x256xf32> to vector<1x256xf32>
    %55 = vector.broadcast %54 : vector<1x256xf32> to vector<128x256xf32>
    %56 = vector.broadcast %cst_15 : f32 to vector<128x256xf32>
    %57 = arith.select %52, %55, %56 : vector<128x256xi1>, vector<128x256xf32>
    %58 = arith.addf %42, %57 : vector<128x256xf32>
    %c0_i32_16 = arith.constant 0 : i32
    %59 = vector.broadcast %c0_i32_16 : i32 to vector<1x256xi32>
    %60 = arith.cmpi sge, %49, %59 : vector<1x256xi32>
    %cst_17 = arith.constant 1.000000e+00 : f32
    %61 = vector.broadcast %cst_17 : f32 to vector<1x256xf32>
    %62 = arith.subf %61, %50 : vector<1x256xf32>
    %63 = arith.mulf %48, %62 : vector<1x256xf32>
    %64 = arith.select %60, %63, %48 : vector<1x256xi1>, vector<1x256xf32>
    %65 = vector.extract_strided_slice %4 {offsets = [3, 0], sizes = [1, 256], strides = [1, 1]} : vector<8x256xi32> to vector<1x256xi32>
    %66 = vector.extract_strided_slice %10 {offsets = [3, 0], sizes = [1, 256], strides = [1, 1]} : vector<8x256xf32> to vector<1x256xf32>
    %67 = vector.broadcast %65 : vector<1x256xi32> to vector<128x256xi32>
    %68 = arith.cmpi eq, %14, %67 : vector<128x256xi32>
    %69 = arith.mulf %66, %64 : vector<1x256xf32>
    %cst_18 = arith.constant 0.000000e+00 : f32
    %70 = vector.shape_cast %69 : vector<1x256xf32> to vector<1x256xf32>
    %71 = vector.broadcast %70 : vector<1x256xf32> to vector<128x256xf32>
    %72 = vector.broadcast %cst_18 : f32 to vector<128x256xf32>
    %73 = arith.select %68, %71, %72 : vector<128x256xi1>, vector<128x256xf32>
    %74 = arith.addf %58, %73 : vector<128x256xf32>
    %c0_i32_19 = arith.constant 0 : i32
    %75 = vector.broadcast %c0_i32_19 : i32 to vector<1x256xi32>
    %76 = arith.cmpi sge, %65, %75 : vector<1x256xi32>
    %cst_20 = arith.constant 1.000000e+00 : f32
    %77 = vector.broadcast %cst_20 : f32 to vector<1x256xf32>
    %78 = arith.subf %77, %66 : vector<1x256xf32>
    %79 = arith.mulf %64, %78 : vector<1x256xf32>
    %80 = arith.select %76, %79, %64 : vector<1x256xi1>, vector<1x256xf32>
    %81 = vector.extract_strided_slice %4 {offsets = [4, 0], sizes = [1, 256], strides = [1, 1]} : vector<8x256xi32> to vector<1x256xi32>
    %82 = vector.extract_strided_slice %10 {offsets = [4, 0], sizes = [1, 256], strides = [1, 1]} : vector<8x256xf32> to vector<1x256xf32>
    %83 = vector.broadcast %81 : vector<1x256xi32> to vector<128x256xi32>
    %84 = arith.cmpi eq, %14, %83 : vector<128x256xi32>
    %85 = arith.mulf %82, %80 : vector<1x256xf32>
    %cst_21 = arith.constant 0.000000e+00 : f32
    %86 = vector.shape_cast %85 : vector<1x256xf32> to vector<1x256xf32>
    %87 = vector.broadcast %86 : vector<1x256xf32> to vector<128x256xf32>
    %88 = vector.broadcast %cst_21 : f32 to vector<128x256xf32>
    %89 = arith.select %84, %87, %88 : vector<128x256xi1>, vector<128x256xf32>
    %90 = arith.addf %74, %89 : vector<128x256xf32>
    %c0_i32_22 = arith.constant 0 : i32
    %91 = vector.broadcast %c0_i32_22 : i32 to vector<1x256xi32>
    %92 = arith.cmpi sge, %81, %91 : vector<1x256xi32>
    %cst_23 = arith.constant 1.000000e+00 : f32
    %93 = vector.broadcast %cst_23 : f32 to vector<1x256xf32>
    %94 = arith.subf %93, %82 : vector<1x256xf32>
    %95 = arith.mulf %80, %94 : vector<1x256xf32>
    %96 = arith.select %92, %95, %80 : vector<1x256xi1>, vector<1x256xf32>
    %97 = vector.extract_strided_slice %4 {offsets = [5, 0], sizes = [1, 256], strides = [1, 1]} : vector<8x256xi32> to vector<1x256xi32>
    %98 = vector.extract_strided_slice %10 {offsets = [5, 0], sizes = [1, 256], strides = [1, 1]} : vector<8x256xf32> to vector<1x256xf32>
    %99 = vector.broadcast %97 : vector<1x256xi32> to vector<128x256xi32>
    %100 = arith.cmpi eq, %14, %99 : vector<128x256xi32>
    %101 = arith.mulf %98, %96 : vector<1x256xf32>
    %cst_24 = arith.constant 0.000000e+00 : f32
    %102 = vector.shape_cast %101 : vector<1x256xf32> to vector<1x256xf32>
    %103 = vector.broadcast %102 : vector<1x256xf32> to vector<128x256xf32>
    %104 = vector.broadcast %cst_24 : f32 to vector<128x256xf32>
    %105 = arith.select %100, %103, %104 : vector<128x256xi1>, vector<128x256xf32>
    %106 = arith.addf %90, %105 : vector<128x256xf32>
    %c0_i32_25 = arith.constant 0 : i32
    %107 = vector.broadcast %c0_i32_25 : i32 to vector<1x256xi32>
    %108 = arith.cmpi sge, %97, %107 : vector<1x256xi32>
    %cst_26 = arith.constant 1.000000e+00 : f32
    %109 = vector.broadcast %cst_26 : f32 to vector<1x256xf32>
    %110 = arith.subf %109, %98 : vector<1x256xf32>
    %111 = arith.mulf %96, %110 : vector<1x256xf32>
    %112 = arith.select %108, %111, %96 : vector<1x256xi1>, vector<1x256xf32>
    %113 = vector.extract_strided_slice %4 {offsets = [6, 0], sizes = [1, 256], strides = [1, 1]} : vector<8x256xi32> to vector<1x256xi32>
    %114 = vector.extract_strided_slice %10 {offsets = [6, 0], sizes = [1, 256], strides = [1, 1]} : vector<8x256xf32> to vector<1x256xf32>
    %115 = vector.broadcast %113 : vector<1x256xi32> to vector<128x256xi32>
    %116 = arith.cmpi eq, %14, %115 : vector<128x256xi32>
    %117 = arith.mulf %114, %112 : vector<1x256xf32>
    %cst_27 = arith.constant 0.000000e+00 : f32
    %118 = vector.shape_cast %117 : vector<1x256xf32> to vector<1x256xf32>
    %119 = vector.broadcast %118 : vector<1x256xf32> to vector<128x256xf32>
    %120 = vector.broadcast %cst_27 : f32 to vector<128x256xf32>
    %121 = arith.select %116, %119, %120 : vector<128x256xi1>, vector<128x256xf32>
    %122 = arith.addf %106, %121 : vector<128x256xf32>
    %c0_i32_28 = arith.constant 0 : i32
    %123 = vector.broadcast %c0_i32_28 : i32 to vector<1x256xi32>
    %124 = arith.cmpi sge, %113, %123 : vector<1x256xi32>
    %cst_29 = arith.constant 1.000000e+00 : f32
    %125 = vector.broadcast %cst_29 : f32 to vector<1x256xf32>
    %126 = arith.subf %125, %114 : vector<1x256xf32>
    %127 = arith.mulf %112, %126 : vector<1x256xf32>
    %128 = arith.select %124, %127, %112 : vector<1x256xi1>, vector<1x256xf32>
    %129 = vector.extract_strided_slice %4 {offsets = [7, 0], sizes = [1, 256], strides = [1, 1]} : vector<8x256xi32> to vector<1x256xi32>
    %130 = vector.extract_strided_slice %10 {offsets = [7, 0], sizes = [1, 256], strides = [1, 1]} : vector<8x256xf32> to vector<1x256xf32>
    %131 = vector.broadcast %129 : vector<1x256xi32> to vector<128x256xi32>
    %132 = arith.cmpi eq, %14, %131 : vector<128x256xi32>
    %133 = arith.mulf %130, %128 : vector<1x256xf32>
    %cst_30 = arith.constant 0.000000e+00 : f32
    %134 = vector.shape_cast %133 : vector<1x256xf32> to vector<1x256xf32>
    %135 = vector.broadcast %134 : vector<1x256xf32> to vector<128x256xf32>
    %136 = vector.broadcast %cst_30 : f32 to vector<128x256xf32>
    %137 = arith.select %132, %135, %136 : vector<128x256xi1>, vector<128x256xf32>
    %138 = arith.addf %122, %137 : vector<128x256xf32>
    %c0_31 = arith.constant 0 : index
    %c0_32 = arith.constant 0 : index
    %139 = vector.load %arg3[%c0_31, %c0_32] : memref<4x128xbf16, #tpu.memory_space<vmem>>, vector<4x128xbf16>
    %140 = arith.truncf %138 : vector<128x256xf32> to vector<128x256xbf16>
    %cst_33 = arith.constant dense<0.000000e+00> : vector<4x256xf32>
    %141 = tpu.matmul %139, %140, %cst_33 {dimension_numbers = #tpu.dot_dimension_numbers<[1], [0], [0], [1], [0, 0, 1, 1], [], []>} : vector<4x128xbf16>, vector<128x256xbf16>, vector<4x256xf32> -> vector<4x256xf32>
    %c0_34 = arith.constant 0 : index
    %c0_35 = arith.constant 0 : index
    %c0_36 = arith.constant 0 : index
    %142 = vector.load %arg6[%c0_34, %c0_35, %c0_36] : memref<1x4x256xf32, #tpu.memory_space<vmem>>, vector<1x4x256xf32>
    %143 = vector.shape_cast %142 : vector<1x4x256xf32> to vector<4x256xf32>
    %144 = arith.addf %143, %141 : vector<4x256xf32>
    %c0_37 = arith.constant 0 : index
    %c0_38 = arith.constant 0 : index
    %c0_39 = arith.constant 0 : index
    %145 = vector.load %arg6[%c0_37, %c0_38, %c0_39] : memref<1x4x256xf32, #tpu.memory_space<vmem>>, vector<1x4x256xf32>
    %146 = vector.shape_cast %145 : vector<1x4x256xf32> to vector<4x256xf32>
    %147 = vector.shape_cast %144 : vector<4x256xf32> to vector<1x4x256xf32>
    tpu.vector_store %arg6[%c0_37, %c0_38, %c0_39], %147 {strides = array<i32>} : memref<1x4x256xf32, #tpu.memory_space<vmem>>, vector<1x4x256xf32>,
    return
  }
  func.func @transform_0(%arg0: i32, %arg1: i32, %arg2: i32) -> (i32, i32) {
    %c0_i32 = arith.constant 0 : i32
    %c0_i32_0 = arith.constant 0 : i32
    return %c0_i32, %arg2 : i32, i32
  }
  func.func @transform_1(%arg0: i32, %arg1: i32, %arg2: i32) -> (i32, i32, i32) {
    %c0_i32 = arith.constant 0 : i32
    %c0_i32_0 = arith.constant 0 : i32
    return %arg0, %c0_i32, %arg1 : i32, i32, i32
  }
  func.func @transform_2(%arg0: i32, %arg1: i32, %arg2: i32) -> (i32, i32, i32) {
    %c0_i32 = arith.constant 0 : i32
    %c0_i32_0 = arith.constant 0 : i32
    return %arg0, %c0_i32, %arg1 : i32, i32, i32
  }
  func.func @transform_3(%arg0: i32, %arg1: i32, %arg2: i32) -> (i32, i32, i32) {
    %c0_i32 = arith.constant 0 : i32
    %c0_i32_0 = arith.constant 0 : i32
    return %arg0, %c0_i32, %arg1 : i32, i32, i32
  }
}

</mosaic_0001>

<llo_original>
// kernel: tpu_custom_call.1
$region0: #{tpu_custom_call.1}
  #allocation0 [shape = 'u32[]', space=smem, size = 0x4, offset = 0x4, fixed_abs, tag = 'smem constant byte address 0x4 - core index']
  #allocation1 [shape = 'u32[144,128]{1,0:T(1,128)}', space=vmem, size = 0x12000, scoped, tag = 'internal scratch']
  %s0 = inlined_call_operand.hbm [shape: bf16[4,128], index: 0, kind: input, shape index: {}]
  %s1 = inlined_call_operand.hbm [shape: s32[2,8,256], index: 1, kind: input, shape index: {}]
  %s2 = inlined_call_operand.hbm [shape: f32[2,8,256], index: 2, kind: input, shape index: {}]
  %s3 = inlined_call_operand.hbm [shape: f32[2,4,256], index: 3, kind: output, shape index: {}]
  %s4 = sld [smem:[#allocation0]]
  $region61: #{tpu_custom_call.1} parent=0
    _
  %s6 = ssub.s32 1, %s4
  %s7 = scalar_select 0, %s6, %s4
  $region1: #{tpu_custom_call.1} parent=0
    #allocation2 [shape = 'u8[1024]{0}', space=vmem, size = 0x400, scoped, tag = 'input window, operand 0, single buffered']
    #allocation3 [shape = 's32[2]{0}', space=sflag, size = 0x8, scoped, tag = 'scoped memory for tpu_custom_call.1']
    #allocation4 [shape = 's32[2]{0}', space=sflag, size = 0x8, scoped, tag = 'scoped memory for tpu_custom_call.1']
    #allocation5 [shape = 'u8[16384]{0}', space=vmem, size = 0x4000, scoped, tag = 'input window, operand 1']
    #allocation6 [shape = 's32[2]{0}', space=sflag, size = 0x8, scoped, tag = 'scoped memory for tpu_custom_call.1']
    #allocation7 [shape = 'u8[16384]{0}', space=vmem, size = 0x4000, scoped, tag = 'input window, operand 2']
    #allocation8 [shape = 'u8[8192]{0}', space=vmem, size = 0x2000, scoped, tag = 'output window, operand 0']
    %8 = vsyncpa [#allocation3], 0
    %9 = vsyncpa [#allocation6], 0
    %s10 = scalar_lea.sflag [#allocation6], 1
    %11 = vsyncpa %s10, 0
    %12 = vsyncpa [#allocation4], 0
    %s13 = scalar_lea.sflag [#allocation4], 1
    %14 = vsyncpa %s13, 0
    loop: start=0, step=1, limit=4
    $region2: #{tpu_custom_call.1} parent=1 // loop_pre_header
      _
    $region3: #{tpu_custom_call.1} parent=1 // loop_header
      %s16 = sphi 0, %s20
      %p17 = scmp.ge.s32.totalorder %s16, 4
      %s23 = sphi 0, %s42
      %s24 = sphi 0, %s38
      %s25 = sphi 0, %s34
      %s26 = sphi 0, %s23
      %s27 = sphi 0, %s24
      %s28 = sphi 0, %s25
      %s29 = sphi 0, %s26
      %s30 = sphi 0, %s27
      %s31 = sphi 0, %s28
      %s45 = sphi 0, %s47
      %s48 = sphi 0, %s45
      %s49 = sphi 0, %s48
      %s65 = sphi 0, %s49
      %s73 = sphi 0, %s75
      %s76 = sphi 0, %s73
      %s77 = sphi 0, %s76
      %s93 = sphi 0, %s77
      %s101 = sphi 0, %s103
      %s104 = sphi 0, %s101
      %s105 = sphi 0, %s104
      %s121 = sphi 0, %s105
      %s129 = sphi 0, %s131
      %s132 = sphi 0, %s129
      %s133 = sphi 0, %s132
      %s149 = sphi 0, %s133
    $region4: #{tpu_custom_call.1} parent=1 // loop_header_branch
      %19 = sbr.rel (%p17) target = $region8
    $region5: #{tpu_custom_call.1} parent=1 // loop_body
      %s21 = ssub.s32 %s16, 1
      %s22 = ssub.s32 %s16, 2
      %s32 = sadd.s32 1, %s25
      %p33 = scmp.ge.s32.totalorder %s32, 1
      %s34 = scalar_select %p33, 0, %s32
      %s35 = sadd.s32 1, %s24
      %s36 = scalar_select %p33, %s35, %s24
      %p37 = scmp.ge.s32.totalorder %s36, 1
      %s38 = scalar_select %p37, 0, %s36
      %s39 = sadd.s32 1, %s23
      %s40 = scalar_select %p37, %s39, %s23
      %p41 = scmp.ge.s32.totalorder %s40, 2
      %s42 = scalar_select %p41, 0, %s40
      %s43 = ssub.s32 %s25, %s34
      %p44 = scmp.eq.s32.totalorder %s43, 0
      %s46 = sadd.s32 %s45, 1
      %s47 = scalar_select %p44, %s45, %s46
      %p50 = pneg %p44
      %p51 = scmp.eq.s32.totalorder %s16, 1
      %p52 = por %p50, %p51
      %p53 = scmp.ne.s32.totalorder %s45, %s48
      %p54 = scmp.eq.s32.totalorder %s16, 0
      %p55 = por %p53, %p54
      %p56 = scmp.ne.s32.totalorder %s45, %s48
      %p57 = scmp.eq.s32.totalorder %s21, 1
      %p58 = por %p56, %p57
      %p59 = scmp.ne.s32.totalorder %s48, %s49
      %p60 = scmp.eq.s32.totalorder %s21, 0
      %p61 = por %p59, %p60
      %p62 = scmp.ne.s32.totalorder %s48, %s49
      %p63 = scmp.eq.s32.totalorder %s22, 1
      %p64 = por %p62, %p63
      %p66 = scmp.ne.s32.totalorder %s49, %s65
      %p67 = scmp.eq.s32.totalorder %s22, 0
      %p68 = por %p66, %p67
      %s69 = ssub.s32 %s23, %s42
      %s70 = ssub.s32 %s24, %s38
      %s71 = sor.u32 %s69, %s70
      %p72 = scmp.eq.s32.totalorder %s71, 0
      %s74 = sadd.s32 %s73, 1
      %s75 = scalar_select %p72, %s73, %s74
      %p78 = pneg %p72
      %p79 = scmp.eq.s32.totalorder %s16, 1
      %p80 = por %p78, %p79
      %p81 = scmp.ne.s32.totalorder %s73, %s76
      %p82 = scmp.eq.s32.totalorder %s16, 0
      %p83 = por %p81, %p82
      %p84 = scmp.ne.s32.totalorder %s73, %s76
      %p85 = scmp.eq.s32.totalorder %s21, 1
      %p86 = por %p84, %p85
      %p87 = scmp.ne.s32.totalorder %s76, %s77
      %p88 = scmp.eq.s32.totalorder %s21, 0
      %p89 = por %p87, %p88
      %p90 = scmp.ne.s32.totalorder %s76, %s77
      %p91 = scmp.eq.s32.totalorder %s22, 1
      %p92 = por %p90, %p91
      %p94 = scmp.ne.s32.totalorder %s77, %s93
      %p95 = scmp.eq.s32.totalorder %s22, 0
      %p96 = por %p94, %p95
      %s97 = ssub.s32 %s23, %s42
      %s98 = ssub.s32 %s24, %s38
      %s99 = sor.u32 %s97, %s98
      %p100 = scmp.eq.s32.totalorder %s99, 0
      %s102 = sadd.s32 %s101, 1
      %s103 = scalar_select %p100, %s101, %s102
      %p106 = pneg %p100
      %p107 = scmp.eq.s32.totalorder %s16, 1
      %p108 = por %p106, %p107
      %p109 = scmp.ne.s32.totalorder %s101, %s104
      %p110 = scmp.eq.s32.totalorder %s16, 0
      %p111 = por %p109, %p110
      %p112 = scmp.ne.s32.totalorder %s101, %s104
      %p113 = scmp.eq.s32.totalorder %s21, 1
      %p114 = por %p112, %p113
      %p115 = scmp.ne.s32.totalorder %s104, %s105
      %p116 = scmp.eq.s32.totalorder %s21, 0
      %p117 = por %p115, %p116
      %p118 = scmp.ne.s32.totalorder %s104, %s105
      %p119 = scmp.eq.s32.totalorder %s22, 1
      %p120 = por %p118, %p119
      %p122 = scmp.ne.s32.totalorder %s105, %s121
      %p123 = scmp.eq.s32.totalorder %s22, 0
      %p124 = por %p122, %p123
      %s125 = ssub.s32 %s23, %s42
      %s126 = ssub.s32 %s24, %s38
      %s127 = sor.u32 %s125, %s126
      %p128 = scmp.eq.s32.totalorder %s127, 0
      %s130 = sadd.s32 %s129, 1
      %s131 = scalar_select %p128, %s129, %s130
      %p134 = pneg %p128
      %p135 = scmp.eq.s32.totalorder %s16, 1
      %p136 = por %p134, %p135
      %p137 = scmp.ne.s32.totalorder %s129, %s132
      %p138 = scmp.eq.s32.totalorder %s16, 0
      %p139 = por %p137, %p138
      %p140 = scmp.ne.s32.totalorder %s129, %s132
      %p141 = scmp.eq.s32.totalorder %s21, 1
      %p142 = por %p140, %p141
      %p143 = scmp.ne.s32.totalorder %s132, %s133
      %p144 = scmp.eq.s32.totalorder %s21, 0
      %p145 = por %p143, %p144
      %p146 = scmp.ne.s32.totalorder %s132, %s133
      %p147 = scmp.eq.s32.totalorder %s22, 1
      %p148 = por %p146, %p147
      %p150 = scmp.ne.s32.totalorder %s133, %s149
      %p151 = scmp.eq.s32.totalorder %s22, 0
      %p152 = por %p150, %p151
      %p153 = scmp.le.s32.totalorder 1, %s16
      %p154 = scmp.lt.s32.totalorder %s16, 3
      %p155 = pnand %p153, %p154
      %p156 = pneg %p155
      // Predicated region
      $region9: #{tpu_custom_call.1} parent=5 // pred_check
        _
      $region10: #{tpu_custom_call.1} parent=5 // pred_check_branch
        %158 = sbr.rel (%p155) target = $region12
      $region11: #{tpu_custom_call.1} parent=5 // pred_region
        %s159 = ssub.s32 %s16, 1
        // Predicated region
        $region13: #{tpu_custom_call.1} parent=11 // pred_check
          %p160 = pneg %p61
        $region14: #{tpu_custom_call.1} parent=11 // pred_check_branch
          %162 = sbr.rel (%p160) target = $region16
        $region15: #{tpu_custom_call.1} parent=11 // pred_region
          %s164 = ssub.s32 32, 32
          %165 = vsyncadd [#allocation3], %s164
          %s166 = smul.addr %s28, 32
          %s167 = scalar_lea.hbm %s0, %s166
          %s169 = sshll.u32 [#allocation2], 4
          %s170 = int_to_ptr.vmem [resolvable:$true] %s169
          %172 = dma.hbm_to_vmem [thread:$0]  %s167, 32, %s170, [#allocation3]
        $region16: #{tpu_custom_call.1} parent=11 // pred_fallthru
          _
      $region12: #{tpu_custom_call.1} parent=5 // pred_fallthru
        _
      %p173 = scmp.lt.s32.totalorder %s16, 2
      // Predicated region
      $region17: #{tpu_custom_call.1} parent=5 // pred_check
        %p174 = pneg %p173
      $region18: #{tpu_custom_call.1} parent=5 // pred_check_branch
        %176 = sbr.rel (%p174) target = $region20
      $region19: #{tpu_custom_call.1} parent=5 // pred_region
        // Predicated region
        $region21: #{tpu_custom_call.1} parent=19 // pred_check
          %p177 = pneg %p83
        $region22: #{tpu_custom_call.1} parent=19 // pred_check_branch
          %179 = sbr.rel (%p177) target = $region24
        $region23: #{tpu_custom_call.1} parent=19 // pred_region
          %s180 = sand.u32 %s16, 1
          %s181 = scalar_lea.sflag [#allocation6], %s180
          %s182 = sand.u32 %s73, 1
          %s183 = smul.addr %s182, 16
          %s184 = scalar_lea.vmem [#allocation5], %s183
          %s185 = smul.u32 2, %s24
          %s187 = ssub.s32 256, 256
          %188 = vsyncadd %s181, %s187
          %s189 = smul.addr %s23, 2
          %s190 = sadd.s32 %s185, %s189
          %s191 = smul.addr %s190, 128
          %s192 = scalar_lea.hbm %s1, %s191
          %s194 = sshll.u32 %s184, 4
          %s195 = int_to_ptr.vmem [resolvable:$true] %s194
          %197 = dma.hbm_to_vmem [thread:$0]  %s192, 256, %s195, %s181
        $region24: #{tpu_custom_call.1} parent=19 // pred_fallthru
          _
        // Predicated region
        $region25: #{tpu_custom_call.1} parent=19 // pred_check
          %p198 = pneg %p111
        $region26: #{tpu_custom_call.1} parent=19 // pred_check_branch
          %200 = sbr.rel (%p198) target = $region28
        $region27: #{tpu_custom_call.1} parent=19 // pred_region
          %s201 = sand.u32 %s16, 1
          %s202 = scalar_lea.sflag [#allocation6], %s201
          %s203 = sand.u32 %s101, 1
          %s204 = smul.addr %s203, 16
          %s205 = scalar_lea.vmem [#allocation7], %s204
          %s206 = smul.u32 2, %s24
          %s208 = ssub.s32 256, 256
          %209 = vsyncadd %s202, %s208
          %s210 = smul.addr %s23, 2
          %s211 = sadd.s32 %s206, %s210
          %s212 = smul.addr %s211, 128
          %s213 = scalar_lea.hbm %s2, %s212
          %s215 = sshll.u32 %s205, 4
          %s216 = int_to_ptr.vmem [resolvable:$true] %s215
          %218 = dma.hbm_to_vmem [thread:$0]  %s213, 256, %s216, %s202
        $region28: #{tpu_custom_call.1} parent=19 // pred_fallthru
          _
      $region20: #{tpu_custom_call.1} parent=5 // pred_fallthru
        _
      %p219 = scmp.le.s32.totalorder 1, %s16
      %p220 = scmp.lt.s32.totalorder %s16, 3
      %p221 = pnand %p219, %p220
      %p222 = pneg %p221
      // Predicated region
      $region29: #{tpu_custom_call.1} parent=5 // pred_check
        _
      $region30: #{tpu_custom_call.1} parent=5 // pred_check_branch
        %224 = sbr.rel (%p221) target = $region32
      $region31: #{tpu_custom_call.1} parent=5 // pred_region
        %s225 = ssub.s32 %s16, 1
        // Predicated region
        $region33: #{tpu_custom_call.1} parent=31 // pred_check
          %p226 = pneg %p61
        $region34: #{tpu_custom_call.1} parent=31 // pred_check_branch
          %228 = sbr.rel (%p226) target = $region36
        $region35: #{tpu_custom_call.1} parent=31 // pred_region
          %229 = dma.done [#allocation3], 32
        $region36: #{tpu_custom_call.1} parent=31 // pred_fallthru
          _
        %s230 = sand.u32 %s21, 1
        %s231 = scalar_lea.sflag [#allocation6], %s230
        %s232 = sand.u32 %s76, 1
        %s233 = smul.addr %s232, 16
        %s234 = scalar_lea.vmem [#allocation5], %s233
        // Predicated region
        $region37: #{tpu_custom_call.1} parent=31 // pred_check
          %p235 = pneg %p89
        $region38: #{tpu_custom_call.1} parent=31 // pred_check_branch
          %237 = sbr.rel (%p235) target = $region40
        $region39: #{tpu_custom_call.1} parent=31 // pred_region
          %238 = dma.done %s231, 256
        $region40: #{tpu_custom_call.1} parent=31 // pred_fallthru
          _
        %s239 = sand.u32 %s21, 1
        %s240 = scalar_lea.sflag [#allocation6], %s239
        %s241 = sand.u32 %s104, 1
        %s242 = smul.addr %s241, 16
        %s243 = scalar_lea.vmem [#allocation7], %s242
        // Predicated region
        $region41: #{tpu_custom_call.1} parent=31 // pred_check
          %p244 = pneg %p117
        $region42: #{tpu_custom_call.1} parent=31 // pred_check_branch
          %246 = sbr.rel (%p244) target = $region44
        $region43: #{tpu_custom_call.1} parent=31 // pred_region
          %247 = dma.done %s240, 256
        $region44: #{tpu_custom_call.1} parent=31 // pred_fallthru
          _
        %p248 = pneg %p61
        %p249 = pneg %p58
        %s250 = sand.u32 %s21, 1
        %s251 = scalar_lea.sflag [#allocation6], %s250
        %s252 = sand.u32 %s76, 1
        %s253 = smul.addr %s252, 16
        %s254 = scalar_lea.vmem [#allocation5], %s253
        %p255 = pneg %p89
        %p256 = pneg %p86
        %s257 = sand.u32 %s21, 1
        %s258 = scalar_lea.sflag [#allocation6], %s257
        %s259 = sand.u32 %s104, 1
        %s260 = smul.addr %s259, 16
        %s261 = scalar_lea.vmem [#allocation7], %s260
        %p262 = pneg %p117
        %p263 = pneg %p114
        %p264 = pneg %p145
        %p265 = pneg %p142
        %s266 = sand.u32 %s132, 1
        %s267 = scalar_lea.sflag [#allocation4], %s266
        %s268 = sand.u32 %s132, 1
        %s269 = smul.addr %s268, 8
        %s270 = scalar_lea.vmem [#allocation8], %s269
        %s271 = smul.u32 2, %s27
        %s272 = smul.u32 2, %s27
        %s273 = smul.u32 2, %s27
        %p275 = scmp.eq.s32.totalorder %s28, 0
        // Predicated region
        $region45: #{tpu_custom_call.1} parent=31 // pred_check
          %p276 = pneg %p275
        $region46: #{tpu_custom_call.1} parent=31 // pred_check_branch
          %278 = sbr.rel (%p276) target = $region48
        $region47: #{tpu_custom_call.1} parent=31 // pred_region
          %279 = vst [vmem:[%s270] sm:$0xff] 0.0
        $region48: #{tpu_custom_call.1} parent=31 // pred_fallthru
          _
        %v280 = vld [vmem:[%s234] sm:$0xff]
        %v281 = vld [vmem:[%s234 + $0x8] sm:$0xff]
        %v282 = vld [vmem:[%s243] sm:$0xff]
        %v283 = vld [vmem:[%s243 + $0x8] sm:$0xff]
        %v284 = vmul.f32 %v282, 25.0
        %v285 = vmul.f32 %v283, 25.0
        %v286 = vsub.f32 1.0, %v284
        %v287 = vsub.f32 1.0, %v285
        %s288 = smul.u32 %s28, 128
        %v289 = vlaneseq
        %v290 = vshrl.u32 %v289, 7
        %v291 = vadd.s32 %v290, 8
        %v292 = vadd.s32 %v290, 16
        %v293 = vadd.s32 %v290, 24
        %v294 = vadd.s32 %v290, 32
        %v295 = vadd.s32 %v290, 40
        %v296 = vadd.s32 %v290, 48
        %v297 = vadd.s32 %v290, 56
        %v298 = vadd.s32 %v290, 64
        %v299 = vadd.s32 %v290, 72
        %v300 = vadd.s32 %v290, 80
        %v301 = vadd.s32 %v290, 88
        %v302 = vadd.s32 %v290, 96
        %v303 = vadd.s32 %v290, 104
        %v304 = vadd.s32 %v290, 112
        %v305 = vadd.s32 %v290, 120
        %v306 = vstv %s288
        %v307 = vadd.s32 %v290, %v306
        %v308 = vadd.s32 %v291, %v306
        %v309 = vadd.s32 %v292, %v306
        %v310 = vadd.s32 %v293, %v306
        %v311 = vadd.s32 %v294, %v306
        %v312 = vadd.s32 %v295, %v306
        %v313 = vadd.s32 %v296, %v306
        %v314 = vadd.s32 %v297, %v306
        %v315 = vadd.s32 %v298, %v306
        %v316 = vadd.s32 %v299, %v306
        %v317 = vadd.s32 %v300, %v306
        %v318 = vadd.s32 %v301, %v306
        %v319 = vadd.s32 %v302, %v306
        %v320 = vadd.s32 %v303, %v306
        %v321 = vadd.s32 %v304, %v306
        %v322 = vadd.s32 %v305, %v306
        %v323 = vlaneseq
        %v324 = vshrl.u32 %v323, 7
        %v325 = vsub.s32 0, %v324
        %v326 = vrot.slane %v280, %v325
        %v327 = vlaneseq
        %v328 = vshrl.u32 %v327, 7
        %v329 = vsub.s32 0, %v328
        %v330 = vrot.slane %v281, %v329
        %vm331 = vcmp.eq.s32.totalorder %v307, %v326
        %vm332 = vcmp.eq.s32.totalorder %v307, %v330
        %vm333 = vcmp.eq.s32.totalorder %v308, %v326
        %vm334 = vcmp.eq.s32.totalorder %v308, %v330
        %vm335 = vcmp.eq.s32.totalorder %v309, %v326
        %vm336 = vcmp.eq.s32.totalorder %v309, %v330
        %vm337 = vcmp.eq.s32.totalorder %v310, %v326
        %vm338 = vcmp.eq.s32.totalorder %v310, %v330
        %vm339 = vcmp.eq.s32.totalorder %v311, %v326
        %vm340 = vcmp.eq.s32.totalorder %v311, %v330
        %vm341 = vcmp.eq.s32.totalorder %v312, %v326
        %vm342 = vcmp.eq.s32.totalorder %v312, %v330
        %vm343 = vcmp.eq.s32.totalorder %v313, %v326
        %vm344 = vcmp.eq.s32.totalorder %v313, %v330
        %vm345 = vcmp.eq.s32.totalorder %v314, %v326
        %vm346 = vcmp.eq.s32.totalorder %v314, %v330
        %vm347 = vcmp.eq.s32.totalorder %v315, %v326
        %vm348 = vcmp.eq.s32.totalorder %v315, %v330
        %vm349 = vcmp.eq.s32.totalorder %v316, %v326
        %vm350 = vcmp.eq.s32.totalorder %v316, %v330
        %vm351 = vcmp.eq.s32.totalorder %v317, %v326
        %vm352 = vcmp.eq.s32.totalorder %v317, %v330
        %vm353 = vcmp.eq.s32.totalorder %v318, %v326
        %vm354 = vcmp.eq.s32.totalorder %v318, %v330
        %vm355 = vcmp.eq.s32.totalorder %v319, %v326
        %vm356 = vcmp.eq.s32.totalorder %v319, %v330
        %vm357 = vcmp.eq.s32.totalorder %v320, %v326
        %vm358 = vcmp.eq.s32.totalorder %v320, %v330
        %vm359 = vcmp.eq.s32.totalorder %v321, %v326
        %vm360 = vcmp.eq.s32.totalorder %v321, %v330
        %vm361 = vcmp.eq.s32.totalorder %v322, %v326
        %vm362 = vcmp.eq.s32.totalorder %v322, %v330
        %v363 = vlaneseq
        %v364 = vshrl.u32 %v363, 7
        %v365 = vsub.s32 0, %v364
        %v366 = vrot.slane %v286, %v365
        %v367 = vlaneseq
        %v368 = vshrl.u32 %v367, 7
        %v369 = vsub.s32 0, %v368
        %v370 = vrot.slane %v287, %v369
        %v371 = vsel %vm331, %v366, 0.0
        %v372 = vsel %vm332, %v370, 0.0
        %v373 = vsel %vm333, %v366, 0.0
        %v374 = vsel %vm334, %v370, 0.0
        %v375 = vsel %vm335, %v366, 0.0
        %v376 = vsel %vm336, %v370, 0.0
        %v377 = vsel %vm337, %v366, 0.0
        %v378 = vsel %vm338, %v370, 0.0
        %v379 = vsel %vm339, %v366, 0.0
        %v380 = vsel %vm340, %v370, 0.0
        %v381 = vsel %vm341, %v366, 0.0
        %v382 = vsel %vm342, %v370, 0.0
        %v383 = vsel %vm343, %v366, 0.0
        %v384 = vsel %vm344, %v370, 0.0
        %v385 = vsel %vm345, %v366, 0.0
        %v386 = vsel %vm346, %v370, 0.0
        %v387 = vsel %vm347, %v366, 0.0
        %v388 = vsel %vm348, %v370, 0.0
        %v389 = vsel %vm349, %v366, 0.0
        %v390 = vsel %vm350, %v370, 0.0
        %v391 = vsel %vm351, %v366, 0.0
        %v392 = vsel %vm352, %v370, 0.0
        %v393 = vsel %vm353, %v366, 0.0
        %v394 = vsel %vm354, %v370, 0.0
        %v395 = vsel %vm355, %v366, 0.0
        %v396 = vsel %vm356, %v370, 0.0
        %v397 = vsel %vm357, %v366, 0.0
        %v398 = vsel %vm358, %v370, 0.0
        %v399 = vsel %vm359, %v366, 0.0
        %v400 = vsel %vm360, %v370, 0.0
        %v401 = vsel %vm361, %v366, 0.0
        %v402 = vsel %vm362, %v370, 0.0
        %v403 = vadd.f32 %v371, 0.0
        %v404 = vadd.f32 %v372, 0.0
        %v405 = vadd.f32 %v373, 0.0
        %v406 = vadd.f32 %v374, 0.0
        %v407 = vadd.f32 %v375, 0.0
        %v408 = vadd.f32 %v376, 0.0
        %v409 = vadd.f32 %v377, 0.0
        %v410 = vadd.f32 %v378, 0.0
        %v411 = vadd.f32 %v379, 0.0
        %v412 = vadd.f32 %v380, 0.0
        %v413 = vadd.f32 %v381, 0.0
        %v414 = vadd.f32 %v382, 0.0
        %v415 = vadd.f32 %v383, 0.0
        %v416 = vadd.f32 %v384, 0.0
        %v417 = vadd.f32 %v385, 0.0
        %v418 = vadd.f32 %v386, 0.0
        %v419 = vadd.f32 %v387, 0.0
        %v420 = vadd.f32 %v388, 0.0
        %v421 = vadd.f32 %v389, 0.0
        %v422 = vadd.f32 %v390, 0.0
        %v423 = vadd.f32 %v391, 0.0
        %v424 = vadd.f32 %v392, 0.0
        %v425 = vadd.f32 %v393, 0.0
        %v426 = vadd.f32 %v394, 0.0
        %v427 = vadd.f32 %v395, 0.0
        %v428 = vadd.f32 %v396, 0.0
        %v429 = vadd.f32 %v397, 0.0
        %v430 = vadd.f32 %v398, 0.0
        %v431 = vadd.f32 %v399, 0.0
        %v432 = vadd.f32 %v400, 0.0
        %v433 = vadd.f32 %v401, 0.0
        %v434 = vadd.f32 %v402, 0.0
        %vm435 = vcmp.ge.s32.totalorder %v280, 0
        %vm436 = vcmp.ge.s32.totalorder %v281, 0
        %v437 = vsub.f32 1.0, %v286
        %v438 = vsub.f32 1.0, %v287
        %v439 = vsel %vm435, %v437, 1.0
        %v440 = vsel %vm436, %v438, 1.0
        %v441 = vlaneseq
        %v442 = vshrl.u32 %v441, 7
        %v443 = vsub.s32 1, %v442
        %v444 = vrot.slane %v280, %v443
        %v445 = vlaneseq
        %v446 = vshrl.u32 %v445, 7
        %v447 = vsub.s32 1, %v446
        %v448 = vrot.slane %v281, %v447
        %vm449 = vcmp.eq.s32.totalorder %v307, %v444
        %vm450 = vcmp.eq.s32.totalorder %v307, %v448
        %vm451 = vcmp.eq.s32.totalorder %v308, %v444
        %vm452 = vcmp.eq.s32.totalorder %v308, %v448
        %vm453 = vcmp.eq.s32.totalorder %v309, %v444
        %vm454 = vcmp.eq.s32.totalorder %v309, %v448
        %vm455 = vcmp.eq.s32.totalorder %v310, %v444
        %vm456 = vcmp.eq.s32.totalorder %v310, %v448
        %vm457 = vcmp.eq.s32.totalorder %v311, %v444
        %vm458 = vcmp.eq.s32.totalorder %v311, %v448
        %vm459 = vcmp.eq.s32.totalorder %v312, %v444
        %vm460 = vcmp.eq.s32.totalorder %v312, %v448
        %vm461 = vcmp.eq.s32.totalorder %v313, %v444
        %vm462 = vcmp.eq.s32.totalorder %v313, %v448
        %vm463 = vcmp.eq.s32.totalorder %v314, %v444
        %vm464 = vcmp.eq.s32.totalorder %v314, %v448
        %vm465 = vcmp.eq.s32.totalorder %v315, %v444
        %vm466 = vcmp.eq.s32.totalorder %v315, %v448
        %vm467 = vcmp.eq.s32.totalorder %v316, %v444
        %vm468 = vcmp.eq.s32.totalorder %v316, %v448
        %vm469 = vcmp.eq.s32.totalorder %v317, %v444
        %vm470 = vcmp.eq.s32.totalorder %v317, %v448
        %vm471 = vcmp.eq.s32.totalorder %v318, %v444
        %vm472 = vcmp.eq.s32.totalorder %v318, %v448
        %vm473 = vcmp.eq.s32.totalorder %v319, %v444
        %vm474 = vcmp.eq.s32.totalorder %v319, %v448
        %vm475 = vcmp.eq.s32.totalorder %v320, %v444
        %vm476 = vcmp.eq.s32.totalorder %v320, %v448
        %vm477 = vcmp.eq.s32.totalorder %v321, %v444
        %vm478 = vcmp.eq.s32.totalorder %v321, %v448
        %vm479 = vcmp.eq.s32.totalorder %v322, %v444
        %vm480 = vcmp.eq.s32.totalorder %v322, %v448
        %v483 = vrot.slane %v439, 7
        %v484 = vrot.slane %v440, 7
        %v487 = vmul.f32 %v286, %v483
        %v488 = vmul.f32 %v287, %v484
        %v489 = vlaneseq
        %v490 = vshrl.u32 %v489, 7
        %v491 = vsub.s32 1, %v490
        %v492 = vrot.slane %v487, %v491
        %v493 = vlaneseq
        %v494 = vshrl.u32 %v493, 7
        %v495 = vsub.s32 1, %v494
        %v496 = vrot.slane %v488, %v495
        %v497 = vsel %vm449, %v492, 0.0
        %v498 = vsel %vm450, %v496, 0.0
        %v499 = vsel %vm451, %v492, 0.0
        %v500 = vsel %vm452, %v496, 0.0
        %v501 = vsel %vm453, %v492, 0.0
        %v502 = vsel %vm454, %v496, 0.0
        %v503 = vsel %vm455, %v492, 0.0
        %v504 = vsel %vm456, %v496, 0.0
        %v505 = vsel %vm457, %v492, 0.0
        %v506 = vsel %vm458, %v496, 0.0
        %v507 = vsel %vm459, %v492, 0.0
        %v508 = vsel %vm460, %v496, 0.0
        %v509 = vsel %vm461, %v492, 0.0
        %v510 = vsel %vm462, %v496, 0.0
        %v511 = vsel %vm463, %v492, 0.0
        %v512 = vsel %vm464, %v496, 0.0
        %v513 = vsel %vm465, %v492, 0.0
        %v514 = vsel %vm466, %v496, 0.0
        %v515 = vsel %vm467, %v492, 0.0
        %v516 = vsel %vm468, %v496, 0.0
        %v517 = vsel %vm469, %v492, 0.0
        %v518 = vsel %vm470, %v496, 0.0
        %v519 = vsel %vm471, %v492, 0.0
        %v520 = vsel %vm472, %v496, 0.0
        %v521 = vsel %vm473, %v492, 0.0
        %v522 = vsel %vm474, %v496, 0.0
        %v523 = vsel %vm475, %v492, 0.0
        %v524 = vsel %vm476, %v496, 0.0
        %v525 = vsel %vm477, %v492, 0.0
        %v526 = vsel %vm478, %v496, 0.0
        %v527 = vsel %vm479, %v492, 0.0
        %v528 = vsel %vm480, %v496, 0.0
        %v529 = vadd.f32 %v403, %v497
        %v530 = vadd.f32 %v404, %v498
        %v531 = vadd.f32 %v405, %v499
        %v532 = vadd.f32 %v406, %v500
        %v533 = vadd.f32 %v407, %v501
        %v534 = vadd.f32 %v408, %v502
        %v535 = vadd.f32 %v409, %v503
        %v536 = vadd.f32 %v410, %v504
        %v537 = vadd.f32 %v411, %v505
        %v538 = vadd.f32 %v412, %v506
        %v539 = vadd.f32 %v413, %v507
        %v540 = vadd.f32 %v414, %v508
        %v541 = vadd.f32 %v415, %v509
        %v542 = vadd.f32 %v416, %v510
        %v543 = vadd.f32 %v417, %v511
        %v544 = vadd.f32 %v418, %v512
        %v545 = vadd.f32 %v419, %v513
        %v546 = vadd.f32 %v420, %v514
        %v547 = vadd.f32 %v421, %v515
        %v548 = vadd.f32 %v422, %v516
        %v549 = vadd.f32 %v423, %v517
        %v550 = vadd.f32 %v424, %v518
        %v551 = vadd.f32 %v425, %v519
        %v552 = vadd.f32 %v426, %v520
        %v553 = vadd.f32 %v427, %v521
        %v554 = vadd.f32 %v428, %v522
        %v555 = vadd.f32 %v429, %v523
        %v556 = vadd.f32 %v430, %v524
        %v557 = vadd.f32 %v431, %v525
        %v558 = vadd.f32 %v432, %v526
        %v559 = vadd.f32 %v433, %v527
        %v560 = vadd.f32 %v434, %v528
        %v563 = vrot.slane %v437, 1
        %v564 = vrot.slane %v438, 1
        %v567 = vmul.f32 %v439, %v563
        %v568 = vmul.f32 %v440, %v564
        %v571 = vrot.slane %v567, 7
        %v572 = vrot.slane %v568, 7
        %v575 = vsel %vm435, %v571, %v483
        %v576 = vsel %vm436, %v572, %v484
        %v577 = vlaneseq
        %v578 = vshrl.u32 %v577, 7
        %v579 = vsub.s32 2, %v578
        %v580 = vrot.slane %v280, %v579
        %v581 = vlaneseq
        %v582 = vshrl.u32 %v581, 7
        %v583 = vsub.s32 2, %v582
        %v584 = vrot.slane %v281, %v583
        %vm585 = vcmp.eq.s32.totalorder %v307, %v580
        %vm586 = vcmp.eq.s32.totalorder %v307, %v584
        %vm587 = vcmp.eq.s32.totalorder %v308, %v580
        %vm588 = vcmp.eq.s32.totalorder %v308, %v584
        %vm589 = vcmp.eq.s32.totalorder %v309, %v580
        %vm590 = vcmp.eq.s32.totalorder %v309, %v584
        %vm591 = vcmp.eq.s32.totalorder %v310, %v580
        %vm592 = vcmp.eq.s32.totalorder %v310, %v584
        %vm593 = vcmp.eq.s32.totalorder %v311, %v580
        %vm594 = vcmp.eq.s32.totalorder %v311, %v584
        %vm595 = vcmp.eq.s32.totalorder %v312, %v580
        %vm596 = vcmp.eq.s32.totalorder %v312, %v584
        %vm597 = vcmp.eq.s32.totalorder %v313, %v580
        %vm598 = vcmp.eq.s32.totalorder %v313, %v584
        %vm599 = vcmp.eq.s32.totalorder %v314, %v580
        %vm600 = vcmp.eq.s32.totalorder %v314, %v584
        %vm601 = vcmp.eq.s32.totalorder %v315, %v580
        %vm602 = vcmp.eq.s32.totalorder %v315, %v584
        %vm603 = vcmp.eq.s32.totalorder %v316, %v580
        %vm604 = vcmp.eq.s32.totalorder %v316, %v584
        %vm605 = vcmp.eq.s32.totalorder %v317, %v580
        %vm606 = vcmp.eq.s32.totalorder %v317, %v584
        %vm607 = vcmp.eq.s32.totalorder %v318, %v580
        %vm608 = vcmp.eq.s32.totalorder %v318, %v584
        %vm609 = vcmp.eq.s32.totalorder %v319, %v580
        %vm610 = vcmp.eq.s32.totalorder %v319, %v584
        %vm611 = vcmp.eq.s32.totalorder %v320, %v580
        %vm612 = vcmp.eq.s32.totalorder %v320, %v584
        %vm613 = vcmp.eq.s32.totalorder %v321, %v580
        %vm614 = vcmp.eq.s32.totalorder %v321, %v584
        %vm615 = vcmp.eq.s32.totalorder %v322, %v580
        %vm616 = vcmp.eq.s32.totalorder %v322, %v584
        %v619 = vrot.slane %v575, 7
        %v620 = vrot.slane %v576, 7
        %v623 = vmul.f32 %v286, %v619
        %v624 = vmul.f32 %v287, %v620
        %v625 = vlaneseq
        %v626 = vshrl.u32 %v625, 7
        %v627 = vsub.s32 2, %v626
        %v628 = vrot.slane %v623, %v627
        %v629 = vlaneseq
        %v630 = vshrl.u32 %v629, 7
        %v631 = vsub.s32 2, %v630
        %v632 = vrot.slane %v624, %v631
        %v633 = vsel %vm585, %v628, 0.0
        %v634 = vsel %vm586, %v632, 0.0
        %v635 = vsel %vm587, %v628, 0.0
        %v636 = vsel %vm588, %v632, 0.0
        %v637 = vsel %vm589, %v628, 0.0
        %v638 = vsel %vm590, %v632, 0.0
        %v639 = vsel %vm591, %v628, 0.0
        %v640 = vsel %vm592, %v632, 0.0
        %v641 = vsel %vm593, %v628, 0.0
        %v642 = vsel %vm594, %v632, 0.0
        %v643 = vsel %vm595, %v628, 0.0
        %v644 = vsel %vm596, %v632, 0.0
        %v645 = vsel %vm597, %v628, 0.0
        %v646 = vsel %vm598, %v632, 0.0
        %v647 = vsel %vm599, %v628, 0.0
        %v648 = vsel %vm600, %v632, 0.0
        %v649 = vsel %vm601, %v628, 0.0
        %v650 = vsel %vm602, %v632, 0.0
        %v651 = vsel %vm603, %v628, 0.0
        %v652 = vsel %vm604, %v632, 0.0
        %v653 = vsel %vm605, %v628, 0.0
        %v654 = vsel %vm606, %v632, 0.0
        %v655 = vsel %vm607, %v628, 0.0
        %v656 = vsel %vm608, %v632, 0.0
        %v657 = vsel %vm609, %v628, 0.0
        %v658 = vsel %vm610, %v632, 0.0
        %v659 = vsel %vm611, %v628, 0.0
        %v660 = vsel %vm612, %v632, 0.0
        %v661 = vsel %vm613, %v628, 0.0
        %v662 = vsel %vm614, %v632, 0.0
        %v663 = vsel %vm615, %v628, 0.0
        %v664 = vsel %vm616, %v632, 0.0
        %v665 = vadd.f32 %v529, %v633
        %v666 = vadd.f32 %v530, %v634
        %v667 = vadd.f32 %v531, %v635
        %v668 = vadd.f32 %v532, %v636
        %v669 = vadd.f32 %v533, %v637
        %v670 = vadd.f32 %v534, %v638
        %v671 = vadd.f32 %v535, %v639
        %v672 = vadd.f32 %v536, %v640
        %v673 = vadd.f32 %v537, %v641
        %v674 = vadd.f32 %v538, %v642
        %v675 = vadd.f32 %v539, %v643
        %v676 = vadd.f32 %v540, %v644
        %v677 = vadd.f32 %v541, %v645
        %v678 = vadd.f32 %v542, %v646
        %v679 = vadd.f32 %v543, %v647
        %v680 = vadd.f32 %v544, %v648
        %v681 = vadd.f32 %v545, %v649
        %v682 = vadd.f32 %v546, %v650
        %v683 = vadd.f32 %v547, %v651
        %v684 = vadd.f32 %v548, %v652
        %v685 = vadd.f32 %v549, %v653
        %v686 = vadd.f32 %v550, %v654
        %v687 = vadd.f32 %v551, %v655
        %v688 = vadd.f32 %v552, %v656
        %v689 = vadd.f32 %v553, %v657
        %v690 = vadd.f32 %v554, %v658
        %v691 = vadd.f32 %v555, %v659
        %v692 = vadd.f32 %v556, %v660
        %v693 = vadd.f32 %v557, %v661
        %v694 = vadd.f32 %v558, %v662
        %v695 = vadd.f32 %v559, %v663
        %v696 = vadd.f32 %v560, %v664
        %v697 = vmul.f32 %v575, %v563
        %v698 = vmul.f32 %v576, %v564
        %v701 = vrot.slane %v697, 7
        %v702 = vrot.slane %v698, 7
        %v705 = vsel %vm435, %v701, %v619
        %v706 = vsel %vm436, %v702, %v620
        %v707 = vlaneseq
        %v708 = vshrl.u32 %v707, 7
        %v709 = vsub.s32 3, %v708
        %v710 = vrot.slane %v280, %v709
        %v711 = vlaneseq
        %v712 = vshrl.u32 %v711, 7
        %v713 = vsub.s32 3, %v712
        %v714 = vrot.slane %v281, %v713
        %vm715 = vcmp.eq.s32.totalorder %v307, %v710
        %vm716 = vcmp.eq.s32.totalorder %v307, %v714
        %vm717 = vcmp.eq.s32.totalorder %v308, %v710
        %vm718 = vcmp.eq.s32.totalorder %v308, %v714
        %vm719 = vcmp.eq.s32.totalorder %v309, %v710
        %vm720 = vcmp.eq.s32.totalorder %v309, %v714
        %vm721 = vcmp.eq.s32.totalorder %v310, %v710
        %vm722 = vcmp.eq.s32.totalorder %v310, %v714
        %vm723 = vcmp.eq.s32.totalorder %v311, %v710
        %vm724 = vcmp.eq.s32.totalorder %v311, %v714
        %vm725 = vcmp.eq.s32.totalorder %v312, %v710
        %vm726 = vcmp.eq.s32.totalorder %v312, %v714
        %vm727 = vcmp.eq.s32.totalorder %v313, %v710
        %vm728 = vcmp.eq.s32.totalorder %v313, %v714
        %vm729 = vcmp.eq.s32.totalorder %v314, %v710
        %vm730 = vcmp.eq.s32.totalorder %v314, %v714
        %vm731 = vcmp.eq.s32.totalorder %v315, %v710
        %vm732 = vcmp.eq.s32.totalorder %v315, %v714
        %vm733 = vcmp.eq.s32.totalorder %v316, %v710
        %vm734 = vcmp.eq.s32.totalorder %v316, %v714
        %vm735 = vcmp.eq.s32.totalorder %v317, %v710
        %vm736 = vcmp.eq.s32.totalorder %v317, %v714
        %vm737 = vcmp.eq.s32.totalorder %v318, %v710
        %vm738 = vcmp.eq.s32.totalorder %v318, %v714
        %vm739 = vcmp.eq.s32.totalorder %v319, %v710
        %vm740 = vcmp.eq.s32.totalorder %v319, %v714
        %vm741 = vcmp.eq.s32.totalorder %v320, %v710
        %vm742 = vcmp.eq.s32.totalorder %v320, %v714
        %vm743 = vcmp.eq.s32.totalorder %v321, %v710
        %vm744 = vcmp.eq.s32.totalorder %v321, %v714
        %vm745 = vcmp.eq.s32.totalorder %v322, %v710
        %vm746 = vcmp.eq.s32.totalorder %v322, %v714
        %v749 = vrot.slane %v705, 7
        %v750 = vrot.slane %v706, 7
        %v753 = vmul.f32 %v286, %v749
        %v754 = vmul.f32 %v287, %v750
        %v755 = vlaneseq
        %v756 = vshrl.u32 %v755, 7
        %v757 = vsub.s32 3, %v756
        %v758 = vrot.slane %v753, %v757
        %v759 = vlaneseq
        %v760 = vshrl.u32 %v759, 7
        %v761 = vsub.s32 3, %v760
        %v762 = vrot.slane %v754, %v761
        %v763 = vsel %vm715, %v758, 0.0
        %v764 = vsel %vm716, %v762, 0.0
        %v765 = vsel %vm717, %v758, 0.0
        %v766 = vsel %vm718, %v762, 0.0
        %v767 = vsel %vm719, %v758, 0.0
        %v768 = vsel %vm720, %v762, 0.0
        %v769 = vsel %vm721, %v758, 0.0
        %v770 = vsel %vm722, %v762, 0.0
        %v771 = vsel %vm723, %v758, 0.0
        %v772 = vsel %vm724, %v762, 0.0
        %v773 = vsel %vm725, %v758, 0.0
        %v774 = vsel %vm726, %v762, 0.0
        %v775 = vsel %vm727, %v758, 0.0
        %v776 = vsel %vm728, %v762, 0.0
        %v777 = vsel %vm729, %v758, 0.0
        %v778 = vsel %vm730, %v762, 0.0
        %v779 = vsel %vm731, %v758, 0.0
        %v780 = vsel %vm732, %v762, 0.0
        %v781 = vsel %vm733, %v758, 0.0
        %v782 = vsel %vm734, %v762, 0.0
        %v783 = vsel %vm735, %v758, 0.0
        %v784 = vsel %vm736, %v762, 0.0
        %v785 = vsel %vm737, %v758, 0.0
        %v786 = vsel %vm738, %v762, 0.0
        %v787 = vsel %vm739, %v758, 0.0
        %v788 = vsel %vm740, %v762, 0.0
        %v789 = vsel %vm741, %v758, 0.0
        %v790 = vsel %vm742, %v762, 0.0
        %v791 = vsel %vm743, %v758, 0.0
        %v792 = vsel %vm744, %v762, 0.0
        %v793 = vsel %vm745, %v758, 0.0
        %v794 = vsel %vm746, %v762, 0.0
        %v795 = vadd.f32 %v665, %v763
        %v796 = vadd.f32 %v666, %v764
        %v797 = vadd.f32 %v667, %v765
        %v798 = vadd.f32 %v668, %v766
        %v799 = vadd.f32 %v669, %v767
        %v800 = vadd.f32 %v670, %v768
        %v801 = vadd.f32 %v671, %v769
        %v802 = vadd.f32 %v672, %v770
        %v803 = vadd.f32 %v673, %v771
        %v804 = vadd.f32 %v674, %v772
        %v805 = vadd.f32 %v675, %v773
        %v806 = vadd.f32 %v676, %v774
        %v807 = vadd.f32 %v677, %v775
        %v808 = vadd.f32 %v678, %v776
        %v809 = vadd.f32 %v679, %v777
        %v810 = vadd.f32 %v680, %v778
        %v811 = vadd.f32 %v681, %v779
        %v812 = vadd.f32 %v682, %v780
        %v813 = vadd.f32 %v683, %v781
        %v814 = vadd.f32 %v684, %v782
        %v815 = vadd.f32 %v685, %v783
        %v816 = vadd.f32 %v686, %v784
        %v817 = vadd.f32 %v687, %v785
        %v818 = vadd.f32 %v688, %v786
        %v819 = vadd.f32 %v689, %v787
        %v820 = vadd.f32 %v690, %v788
        %v821 = vadd.f32 %v691, %v789
        %v822 = vadd.f32 %v692, %v790
        %v823 = vadd.f32 %v693, %v791
        %v824 = vadd.f32 %v694, %v792
        %v825 = vadd.f32 %v695, %v793
        %v826 = vadd.f32 %v696, %v794
        %v827 = vmul.f32 %v705, %v563
        %v828 = vmul.f32 %v706, %v564
        %v831 = vrot.slane %v827, 7
        %v832 = vrot.slane %v828, 7
        %v835 = vsel %vm435, %v831, %v749
        %v836 = vsel %vm436, %v832, %v750
        %v837 = vlaneseq
        %v838 = vshrl.u32 %v837, 7
        %v839 = vsub.s32 4, %v838
        %v840 = vrot.slane %v280, %v839
        %v841 = vlaneseq
        %v842 = vshrl.u32 %v841, 7
        %v843 = vsub.s32 4, %v842
        %v844 = vrot.slane %v281, %v843
        %vm845 = vcmp.eq.s32.totalorder %v307, %v840
        %vm846 = vcmp.eq.s32.totalorder %v307, %v844
        %vm847 = vcmp.eq.s32.totalorder %v308, %v840
        %vm848 = vcmp.eq.s32.totalorder %v308, %v844
        %vm849 = vcmp.eq.s32.totalorder %v309, %v840
        %vm850 = vcmp.eq.s32.totalorder %v309, %v844
        %vm851 = vcmp.eq.s32.totalorder %v310, %v840
        %vm852 = vcmp.eq.s32.totalorder %v310, %v844
        %vm853 = vcmp.eq.s32.totalorder %v311, %v840
        %vm854 = vcmp.eq.s32.totalorder %v311, %v844
        %vm855 = vcmp.eq.s32.totalorder %v312, %v840
        %vm856 = vcmp.eq.s32.totalorder %v312, %v844
        %vm857 = vcmp.eq.s32.totalorder %v313, %v840
        %vm858 = vcmp.eq.s32.totalorder %v313, %v844
        %vm859 = vcmp.eq.s32.totalorder %v314, %v840
        %vm860 = vcmp.eq.s32.totalorder %v314, %v844
        %vm861 = vcmp.eq.s32.totalorder %v315, %v840
        %vm862 = vcmp.eq.s32.totalorder %v315, %v844
        %vm863 = vcmp.eq.s32.totalorder %v316, %v840
        %vm864 = vcmp.eq.s32.totalorder %v316, %v844
        %vm865 = vcmp.eq.s32.totalorder %v317, %v840
        %vm866 = vcmp.eq.s32.totalorder %v317, %v844
        %vm867 = vcmp.eq.s32.totalorder %v318, %v840
        %vm868 = vcmp.eq.s32.totalorder %v318, %v844
        %vm869 = vcmp.eq.s32.totalorder %v319, %v840
        %vm870 = vcmp.eq.s32.totalorder %v319, %v844
        %vm871 = vcmp.eq.s32.totalorder %v320, %v840
        %vm872 = vcmp.eq.s32.totalorder %v320, %v844
        %vm873 = vcmp.eq.s32.totalorder %v321, %v840
        %vm874 = vcmp.eq.s32.totalorder %v321, %v844
        %vm875 = vcmp.eq.s32.totalorder %v322, %v840
        %vm876 = vcmp.eq.s32.totalorder %v322, %v844
        %v879 = vrot.slane %v835, 7
        %v880 = vrot.slane %v836, 7
        %v883 = vmul.f32 %v286, %v879
        %v884 = vmul.f32 %v287, %v880
        %v885 = vlaneseq
        %v886 = vshrl.u32 %v885, 7
        %v887 = vsub.s32 4, %v886
        %v888 = vrot.slane %v883, %v887
        %v889 = vlaneseq
        %v890 = vshrl.u32 %v889, 7
        %v891 = vsub.s32 4, %v890
        %v892 = vrot.slane %v884, %v891
        %v893 = vsel %vm845, %v888, 0.0
        %v894 = vsel %vm846, %v892, 0.0
        %v895 = vsel %vm847, %v888, 0.0
        %v896 = vsel %vm848, %v892, 0.0
        %v897 = vsel %vm849, %v888, 0.0
        %v898 = vsel %vm850, %v892, 0.0
        %v899 = vsel %vm851, %v888, 0.0
        %v900 = vsel %vm852, %v892, 0.0
        %v901 = vsel %vm853, %v888, 0.0
        %v902 = vsel %vm854, %v892, 0.0
        %v903 = vsel %vm855, %v888, 0.0
        %v904 = vsel %vm856, %v892, 0.0
        %v905 = vsel %vm857, %v888, 0.0
        %v906 = vsel %vm858, %v892, 0.0
        %v907 = vsel %vm859, %v888, 0.0
        %v908 = vsel %vm860, %v892, 0.0
        %v909 = vsel %vm861, %v888, 0.0
        %v910 = vsel %vm862, %v892, 0.0
        %v911 = vsel %vm863, %v888, 0.0
        %v912 = vsel %vm864, %v892, 0.0
        %v913 = vsel %vm865, %v888, 0.0
        %v914 = vsel %vm866, %v892, 0.0
        %v915 = vsel %vm867, %v888, 0.0
        %v916 = vsel %vm868, %v892, 0.0
        %v917 = vsel %vm869, %v888, 0.0
        %v918 = vsel %vm870, %v892, 0.0
        %v919 = vsel %vm871, %v888, 0.0
        %v920 = vsel %vm872, %v892, 0.0
        %v921 = vsel %vm873, %v888, 0.0
        %v922 = vsel %vm874, %v892, 0.0
        %v923 = vsel %vm875, %v888, 0.0
        %v924 = vsel %vm876, %v892, 0.0
        %v925 = vadd.f32 %v795, %v893
        %v926 = vadd.f32 %v796, %v894
        %v927 = vadd.f32 %v797, %v895
        %v928 = vadd.f32 %v798, %v896
        %v929 = vadd.f32 %v799, %v897
        %v930 = vadd.f32 %v800, %v898
        %v931 = vadd.f32 %v801, %v899
        %v932 = vadd.f32 %v802, %v900
        %v933 = vadd.f32 %v803, %v901
        %v934 = vadd.f32 %v804, %v902
        %v935 = vadd.f32 %v805, %v903
        %v936 = vadd.f32 %v806, %v904
        %v937 = vadd.f32 %v807, %v905
        %v938 = vadd.f32 %v808, %v906
        %v939 = vadd.f32 %v809, %v907
        %v940 = vadd.f32 %v810, %v908
        %v941 = vadd.f32 %v811, %v909
        %v942 = vadd.f32 %v812, %v910
        %v943 = vadd.f32 %v813, %v911
        %v944 = vadd.f32 %v814, %v912
        %v945 = vadd.f32 %v815, %v913
        %v946 = vadd.f32 %v816, %v914
        %v947 = vadd.f32 %v817, %v915
        %v948 = vadd.f32 %v818, %v916
        %v949 = vadd.f32 %v819, %v917
        %v950 = vadd.f32 %v820, %v918
        %v951 = vadd.f32 %v821, %v919
        %v952 = vadd.f32 %v822, %v920
        %v953 = vadd.f32 %v823, %v921
        %v954 = vadd.f32 %v824, %v922
        %v955 = vadd.f32 %v825, %v923
        %v956 = vadd.f32 %v826, %v924
        %v957 = vmul.f32 %v835, %v563
        %v958 = vmul.f32 %v836, %v564
        %v961 = vrot.slane %v957, 7
        %v962 = vrot.slane %v958, 7
        %v965 = vsel %vm435, %v961, %v879
        %v966 = vsel %vm436, %v962, %v880
        %v967 = vlaneseq
        %v968 = vshrl.u32 %v967, 7
        %v969 = vsub.s32 5, %v968
        %v970 = vrot.slane %v280, %v969
        %v971 = vlaneseq
        %v972 = vshrl.u32 %v971, 7
        %v973 = vsub.s32 5, %v972
        %v974 = vrot.slane %v281, %v973
        %vm975 = vcmp.eq.s32.totalorder %v307, %v970
        %vm976 = vcmp.eq.s32.totalorder %v307, %v974
        %vm977 = vcmp.eq.s32.totalorder %v308, %v970
        %vm978 = vcmp.eq.s32.totalorder %v308, %v974
        %vm979 = vcmp.eq.s32.totalorder %v309, %v970
        %vm980 = vcmp.eq.s32.totalorder %v309, %v974
        %vm981 = vcmp.eq.s32.totalorder %v310, %v970
        %vm982 = vcmp.eq.s32.totalorder %v310, %v974
        %vm983 = vcmp.eq.s32.totalorder %v311, %v970
        %vm984 = vcmp.eq.s32.totalorder %v311, %v974
        %vm985 = vcmp.eq.s32.totalorder %v312, %v970
        %vm986 = vcmp.eq.s32.totalorder %v312, %v974
        %vm987 = vcmp.eq.s32.totalorder %v313, %v970
        %vm988 = vcmp.eq.s32.totalorder %v313, %v974
        %vm989 = vcmp.eq.s32.totalorder %v314, %v970
        %vm990 = vcmp.eq.s32.totalorder %v314, %v974
        %vm991 = vcmp.eq.s32.totalorder %v315, %v970
        %vm992 = vcmp.eq.s32.totalorder %v315, %v974
        %vm993 = vcmp.eq.s32.totalorder %v316, %v970
        %vm994 = vcmp.eq.s32.totalorder %v316, %v974
        %vm995 = vcmp.eq.s32.totalorder %v317, %v970
        %vm996 = vcmp.eq.s32.totalorder %v317, %v974
        %vm997 = vcmp.eq.s32.totalorder %v318, %v970
        %vm998 = vcmp.eq.s32.totalorder %v318, %v974
        %vm999 = vcmp.eq.s32.totalorder %v319, %v970
        %vm1000 = vcmp.eq.s32.totalorder %v319, %v974
        %vm1001 = vcmp.eq.s32.totalorder %v320, %v970
        %vm1002 = vcmp.eq.s32.totalorder %v320, %v974
        %vm1003 = vcmp.eq.s32.totalorder %v321, %v970
        %vm1004 = vcmp.eq.s32.totalorder %v321, %v974
        %vm1005 = vcmp.eq.s32.totalorder %v322, %v970
        %vm1006 = vcmp.eq.s32.totalorder %v322, %v974
        %v1009 = vrot.slane %v965, 7
        %v1010 = vrot.slane %v966, 7
        %v1013 = vmul.f32 %v286, %v1009
        %v1014 = vmul.f32 %v287, %v1010
        %v1015 = vlaneseq
        %v1016 = vshrl.u32 %v1015, 7
        %v1017 = vsub.s32 5, %v1016
        %v1018 = vrot.slane %v1013, %v1017
        %v1019 = vlaneseq
        %v1020 = vshrl.u32 %v1019, 7
        %v1021 = vsub.s32 5, %v1020
        %v1022 = vrot.slane %v1014, %v1021
        %v1023 = vsel %vm975, %v1018, 0.0
        %v1024 = vsel %vm976, %v1022, 0.0
        %v1025 = vsel %vm977, %v1018, 0.0
        %v1026 = vsel %vm978, %v1022, 0.0
        %v1027 = vsel %vm979, %v1018, 0.0
        %v1028 = vsel %vm980, %v1022, 0.0
        %v1029 = vsel %vm981, %v1018, 0.0
        %v1030 = vsel %vm982, %v1022, 0.0
        %v1031 = vsel %vm983, %v1018, 0.0
        %v1032 = vsel %vm984, %v1022, 0.0
        %v1033 = vsel %vm985, %v1018, 0.0
        %v1034 = vsel %vm986, %v1022, 0.0
        %v1035 = vsel %vm987, %v1018, 0.0
        %v1036 = vsel %vm988, %v1022, 0.0
        %v1037 = vsel %vm989, %v1018, 0.0
        %v1038 = vsel %vm990, %v1022, 0.0
        %v1039 = vsel %vm991, %v1018, 0.0
        %v1040 = vsel %vm992, %v1022, 0.0
        %v1041 = vsel %vm993, %v1018, 0.0
        %v1042 = vsel %vm994, %v1022, 0.0
        %v1043 = vsel %vm995, %v1018, 0.0
        %v1044 = vsel %vm996, %v1022, 0.0
        %v1045 = vsel %vm997, %v1018, 0.0
        %v1046 = vsel %vm998, %v1022, 0.0
        %v1047 = vsel %vm999, %v1018, 0.0
        %v1048 = vsel %vm1000, %v1022, 0.0
        %v1049 = vsel %vm1001, %v1018, 0.0
        %v1050 = vsel %vm1002, %v1022, 0.0
        %v1051 = vsel %vm1003, %v1018, 0.0
        %v1052 = vsel %vm1004, %v1022, 0.0
        %v1053 = vsel %vm1005, %v1018, 0.0
        %v1054 = vsel %vm1006, %v1022, 0.0
        %v1055 = vadd.f32 %v925, %v1023
        %v1056 = vadd.f32 %v926, %v1024
        %v1057 = vadd.f32 %v927, %v1025
        %v1058 = vadd.f32 %v928, %v1026
        %v1059 = vadd.f32 %v929, %v1027
        %v1060 = vadd.f32 %v930, %v1028
        %v1061 = vadd.f32 %v931, %v1029
        %v1062 = vadd.f32 %v932, %v1030
        %v1063 = vadd.f32 %v933, %v1031
        %v1064 = vadd.f32 %v934, %v1032
        %v1065 = vadd.f32 %v935, %v1033
        %v1066 = vadd.f32 %v936, %v1034
        %v1067 = vadd.f32 %v937, %v1035
        %v1068 = vadd.f32 %v938, %v1036
        %v1069 = vadd.f32 %v939, %v1037
        %v1070 = vadd.f32 %v940, %v1038
        %v1071 = vadd.f32 %v941, %v1039
        %v1072 = vadd.f32 %v942, %v1040
        %v1073 = vadd.f32 %v943, %v1041
        %v1074 = vadd.f32 %v944, %v1042
        %v1075 = vadd.f32 %v945, %v1043
        %v1076 = vadd.f32 %v946, %v1044
        %v1077 = vadd.f32 %v947, %v1045
        %v1078 = vadd.f32 %v948, %v1046
        %v1079 = vadd.f32 %v949, %v1047
        %v1080 = vadd.f32 %v950, %v1048
        %v1081 = vadd.f32 %v951, %v1049
        %v1082 = vadd.f32 %v952, %v1050
        %v1083 = vadd.f32 %v953, %v1051
        %v1084 = vadd.f32 %v954, %v1052
        %v1085 = vadd.f32 %v955, %v1053
        %v1086 = vadd.f32 %v956, %v1054
        %v1087 = vmul.f32 %v965, %v563
        %v1088 = vmul.f32 %v966, %v564
        %v1091 = vrot.slane %v1087, 7
        %v1092 = vrot.slane %v1088, 7
        %v1095 = vsel %vm435, %v1091, %v1009
        %v1096 = vsel %vm436, %v1092, %v1010
        %v1097 = vlaneseq
        %v1098 = vshrl.u32 %v1097, 7
        %v1099 = vsub.s32 6, %v1098
        %v1100 = vrot.slane %v280, %v1099
        %v1101 = vlaneseq
        %v1102 = vshrl.u32 %v1101, 7
        %v1103 = vsub.s32 6, %v1102
        %v1104 = vrot.slane %v281, %v1103
        %vm1105 = vcmp.eq.s32.totalorder %v307, %v1100
        %vm1106 = vcmp.eq.s32.totalorder %v307, %v1104
        %vm1107 = vcmp.eq.s32.totalorder %v308, %v1100
        %vm1108 = vcmp.eq.s32.totalorder %v308, %v1104
        %vm1109 = vcmp.eq.s32.totalorder %v309, %v1100
        %vm1110 = vcmp.eq.s32.totalorder %v309, %v1104
        %vm1111 = vcmp.eq.s32.totalorder %v310, %v1100
        %vm1112 = vcmp.eq.s32.totalorder %v310, %v1104
        %vm1113 = vcmp.eq.s32.totalorder %v311, %v1100
        %vm1114 = vcmp.eq.s32.totalorder %v311, %v1104
        %vm1115 = vcmp.eq.s32.totalorder %v312, %v1100
        %vm1116 = vcmp.eq.s32.totalorder %v312, %v1104
        %vm1117 = vcmp.eq.s32.totalorder %v313, %v1100
        %vm1118 = vcmp.eq.s32.totalorder %v313, %v1104
        %vm1119 = vcmp.eq.s32.totalorder %v314, %v1100
        %vm1120 = vcmp.eq.s32.totalorder %v314, %v1104
        %vm1121 = vcmp.eq.s32.totalorder %v315, %v1100
        %vm1122 = vcmp.eq.s32.totalorder %v315, %v1104
        %vm1123 = vcmp.eq.s32.totalorder %v316, %v1100
        %vm1124 = vcmp.eq.s32.totalorder %v316, %v1104
        %vm1125 = vcmp.eq.s32.totalorder %v317, %v1100
        %vm1126 = vcmp.eq.s32.totalorder %v317, %v1104
        %vm1127 = vcmp.eq.s32.totalorder %v318, %v1100
        %vm1128 = vcmp.eq.s32.totalorder %v318, %v1104
        %vm1129 = vcmp.eq.s32.totalorder %v319, %v1100
        %vm1130 = vcmp.eq.s32.totalorder %v319, %v1104
        %vm1131 = vcmp.eq.s32.totalorder %v320, %v1100
        %vm1132 = vcmp.eq.s32.totalorder %v320, %v1104
        %vm1133 = vcmp.eq.s32.totalorder %v321, %v1100
        %vm1134 = vcmp.eq.s32.totalorder %v321, %v1104
        %vm1135 = vcmp.eq.s32.totalorder %v322, %v1100
        %vm1136 = vcmp.eq.s32.totalorder %v322, %v1104
        %v1139 = vrot.slane %v1095, 7
        %v1140 = vrot.slane %v1096, 7
        %v1143 = vmul.f32 %v286, %v1139
        %v1144 = vmul.f32 %v287, %v1140
        %v1145 = vlaneseq
        %v1146 = vshrl.u32 %v1145, 7
        %v1147 = vsub.s32 6, %v1146
        %v1148 = vrot.slane %v1143, %v1147
        %v1149 = vlaneseq
        %v1150 = vshrl.u32 %v1149, 7
        %v1151 = vsub.s32 6, %v1150
        %v1152 = vrot.slane %v1144, %v1151
        %v1153 = vsel %vm1105, %v1148, 0.0
        %v1154 = vsel %vm1106, %v1152, 0.0
        %v1155 = vsel %vm1107, %v1148, 0.0
        %v1156 = vsel %vm1108, %v1152, 0.0
        %v1157 = vsel %vm1109, %v1148, 0.0
        %v1158 = vsel %vm1110, %v1152, 0.0
        %v1159 = vsel %vm1111, %v1148, 0.0
        %v1160 = vsel %vm1112, %v1152, 0.0
        %v1161 = vsel %vm1113, %v1148, 0.0
        %v1162 = vsel %vm1114, %v1152, 0.0
        %v1163 = vsel %vm1115, %v1148, 0.0
        %v1164 = vsel %vm1116, %v1152, 0.0
        %v1165 = vsel %vm1117, %v1148, 0.0
        %v1166 = vsel %vm1118, %v1152, 0.0
        %v1167 = vsel %vm1119, %v1148, 0.0
        %v1168 = vsel %vm1120, %v1152, 0.0
        %v1169 = vsel %vm1121, %v1148, 0.0
        %v1170 = vsel %vm1122, %v1152, 0.0
        %v1171 = vsel %vm1123, %v1148, 0.0
        %v1172 = vsel %vm1124, %v1152, 0.0
        %v1173 = vsel %vm1125, %v1148, 0.0
        %v1174 = vsel %vm1126, %v1152, 0.0
        %v1175 = vsel %vm1127, %v1148, 0.0
        %v1176 = vsel %vm1128, %v1152, 0.0
        %v1177 = vsel %vm1129, %v1148, 0.0
        %v1178 = vsel %vm1130, %v1152, 0.0
        %v1179 = vsel %vm1131, %v1148, 0.0
        %v1180 = vsel %vm1132, %v1152, 0.0
        %v1181 = vsel %vm1133, %v1148, 0.0
        %v1182 = vsel %vm1134, %v1152, 0.0
        %v1183 = vsel %vm1135, %v1148, 0.0
        %v1184 = vsel %vm1136, %v1152, 0.0
        %v1185 = vadd.f32 %v1055, %v1153
        %v1186 = vadd.f32 %v1056, %v1154
        %v1187 = vadd.f32 %v1057, %v1155
        %v1188 = vadd.f32 %v1058, %v1156
        %v1189 = vadd.f32 %v1059, %v1157
        %v1190 = vadd.f32 %v1060, %v1158
        %v1191 = vadd.f32 %v1061, %v1159
        %v1192 = vadd.f32 %v1062, %v1160
        %v1193 = vadd.f32 %v1063, %v1161
        %v1194 = vadd.f32 %v1064, %v1162
        %v1195 = vadd.f32 %v1065, %v1163
        %v1196 = vadd.f32 %v1066, %v1164
        %v1197 = vadd.f32 %v1067, %v1165
        %v1198 = vadd.f32 %v1068, %v1166
        %v1199 = vadd.f32 %v1069, %v1167
        %v1200 = vadd.f32 %v1070, %v1168
        %v1201 = vadd.f32 %v1071, %v1169
        %v1202 = vadd.f32 %v1072, %v1170
        %v1203 = vadd.f32 %v1073, %v1171
        %v1204 = vadd.f32 %v1074, %v1172
        %v1205 = vadd.f32 %v1075, %v1173
        %v1206 = vadd.f32 %v1076, %v1174
        %v1207 = vadd.f32 %v1077, %v1175
        %v1208 = vadd.f32 %v1078, %v1176
        %v1209 = vadd.f32 %v1079, %v1177
        %v1210 = vadd.f32 %v1080, %v1178
        %v1211 = vadd.f32 %v1081, %v1179
        %v1212 = vadd.f32 %v1082, %v1180
        %v1213 = vadd.f32 %v1083, %v1181
        %v1214 = vadd.f32 %v1084, %v1182
        %v1215 = vadd.f32 %v1085, %v1183
        %v1216 = vadd.f32 %v1086, %v1184
        %v1217 = vmul.f32 %v1095, %v563
        %v1218 = vmul.f32 %v1096, %v564
        %v1221 = vrot.slane %v1217, 7
        %v1222 = vrot.slane %v1218, 7
        %v1225 = vsel %vm435, %v1221, %v1139
        %v1226 = vsel %vm436, %v1222, %v1140
        %v1227 = vlaneseq
        %v1228 = vshrl.u32 %v1227, 7
        %v1229 = vsub.s32 7, %v1228
        %v1230 = vrot.slane %v280, %v1229
        %v1231 = vlaneseq
        %v1232 = vshrl.u32 %v1231, 7
        %v1233 = vsub.s32 7, %v1232
        %v1234 = vrot.slane %v281, %v1233
        %vm1235 = vcmp.eq.s32.totalorder %v307, %v1230
        %vm1236 = vcmp.eq.s32.totalorder %v307, %v1234
        %vm1237 = vcmp.eq.s32.totalorder %v308, %v1230
        %vm1238 = vcmp.eq.s32.totalorder %v308, %v1234
        %vm1239 = vcmp.eq.s32.totalorder %v309, %v1230
        %vm1240 = vcmp.eq.s32.totalorder %v309, %v1234
        %vm1241 = vcmp.eq.s32.totalorder %v310, %v1230
        %vm1242 = vcmp.eq.s32.totalorder %v310, %v1234
        %vm1243 = vcmp.eq.s32.totalorder %v311, %v1230
        %vm1244 = vcmp.eq.s32.totalorder %v311, %v1234
        %vm1245 = vcmp.eq.s32.totalorder %v312, %v1230
        %vm1246 = vcmp.eq.s32.totalorder %v312, %v1234
        %vm1247 = vcmp.eq.s32.totalorder %v313, %v1230
        %vm1248 = vcmp.eq.s32.totalorder %v313, %v1234
        %vm1249 = vcmp.eq.s32.totalorder %v314, %v1230
        %vm1250 = vcmp.eq.s32.totalorder %v314, %v1234
        %vm1251 = vcmp.eq.s32.totalorder %v315, %v1230
        %vm1252 = vcmp.eq.s32.totalorder %v315, %v1234
        %vm1253 = vcmp.eq.s32.totalorder %v316, %v1230
        %vm1254 = vcmp.eq.s32.totalorder %v316, %v1234
        %vm1255 = vcmp.eq.s32.totalorder %v317, %v1230
        %vm1256 = vcmp.eq.s32.totalorder %v317, %v1234
        %vm1257 = vcmp.eq.s32.totalorder %v318, %v1230
        %vm1258 = vcmp.eq.s32.totalorder %v318, %v1234
        %vm1259 = vcmp.eq.s32.totalorder %v319, %v1230
        %vm1260 = vcmp.eq.s32.totalorder %v319, %v1234
        %vm1261 = vcmp.eq.s32.totalorder %v320, %v1230
        %vm1262 = vcmp.eq.s32.totalorder %v320, %v1234
        %vm1263 = vcmp.eq.s32.totalorder %v321, %v1230
        %vm1264 = vcmp.eq.s32.totalorder %v321, %v1234
        %vm1265 = vcmp.eq.s32.totalorder %v322, %v1230
        %vm1266 = vcmp.eq.s32.totalorder %v322, %v1234
        %v1269 = vrot.slane %v1225, 7
        %v1270 = vrot.slane %v1226, 7
        %v1273 = vmul.f32 %v286, %v1269
        %v1274 = vmul.f32 %v287, %v1270
        %v1275 = vlaneseq
        %v1276 = vshrl.u32 %v1275, 7
        %v1277 = vsub.s32 7, %v1276
        %v1278 = vrot.slane %v1273, %v1277
        %v1279 = vlaneseq
        %v1280 = vshrl.u32 %v1279, 7
        %v1281 = vsub.s32 7, %v1280
        %v1282 = vrot.slane %v1274, %v1281
        %v1283 = vsel %vm1235, %v1278, 0.0
        %v1284 = vsel %vm1236, %v1282, 0.0
        %v1285 = vsel %vm1237, %v1278, 0.0
        %v1286 = vsel %vm1238, %v1282, 0.0
        %v1287 = vsel %vm1239, %v1278, 0.0
        %v1288 = vsel %vm1240, %v1282, 0.0
        %v1289 = vsel %vm1241, %v1278, 0.0
        %v1290 = vsel %vm1242, %v1282, 0.0
        %v1291 = vsel %vm1243, %v1278, 0.0
        %v1292 = vsel %vm1244, %v1282, 0.0
        %v1293 = vsel %vm1245, %v1278, 0.0
        %v1294 = vsel %vm1246, %v1282, 0.0
        %v1295 = vsel %vm1247, %v1278, 0.0
        %v1296 = vsel %vm1248, %v1282, 0.0
        %v1297 = vsel %vm1249, %v1278, 0.0
        %v1298 = vsel %vm1250, %v1282, 0.0
        %v1299 = vsel %vm1251, %v1278, 0.0
        %v1300 = vsel %vm1252, %v1282, 0.0
        %v1301 = vsel %vm1253, %v1278, 0.0
        %v1302 = vsel %vm1254, %v1282, 0.0
        %v1303 = vsel %vm1255, %v1278, 0.0
        %v1304 = vsel %vm1256, %v1282, 0.0
        %v1305 = vsel %vm1257, %v1278, 0.0
        %v1306 = vsel %vm1258, %v1282, 0.0
        %v1307 = vsel %vm1259, %v1278, 0.0
        %v1308 = vsel %vm1260, %v1282, 0.0
        %v1309 = vsel %vm1261, %v1278, 0.0
        %v1310 = vsel %vm1262, %v1282, 0.0
        %v1311 = vsel %vm1263, %v1278, 0.0
        %v1312 = vsel %vm1264, %v1282, 0.0
        %v1313 = vsel %vm1265, %v1278, 0.0
        %v1314 = vsel %vm1266, %v1282, 0.0
        %v1315 = vadd.f32 %v1185, %v1283
        %v1316 = vadd.f32 %v1186, %v1284
        %v1317 = vadd.f32 %v1187, %v1285
        %v1318 = vadd.f32 %v1188, %v1286
        %v1319 = vadd.f32 %v1189, %v1287
        %v1320 = vadd.f32 %v1190, %v1288
        %v1321 = vadd.f32 %v1191, %v1289
        %v1322 = vadd.f32 %v1192, %v1290
        %v1323 = vadd.f32 %v1193, %v1291
        %v1324 = vadd.f32 %v1194, %v1292
        %v1325 = vadd.f32 %v1195, %v1293
        %v1326 = vadd.f32 %v1196, %v1294
        %v1327 = vadd.f32 %v1197, %v1295
        %v1328 = vadd.f32 %v1198, %v1296
        %v1329 = vadd.f32 %v1199, %v1297
        %v1330 = vadd.f32 %v1200, %v1298
        %v1331 = vadd.f32 %v1201, %v1299
        %v1332 = vadd.f32 %v1202, %v1300
        %v1333 = vadd.f32 %v1203, %v1301
        %v1334 = vadd.f32 %v1204, %v1302
        %v1335 = vadd.f32 %v1205, %v1303
        %v1336 = vadd.f32 %v1206, %v1304
        %v1337 = vadd.f32 %v1207, %v1305
        %v1338 = vadd.f32 %v1208, %v1306
        %v1339 = vadd.f32 %v1209, %v1307
        %v1340 = vadd.f32 %v1210, %v1308
        %v1341 = vadd.f32 %v1211, %v1309
        %v1342 = vadd.f32 %v1212, %v1310
        %v1343 = vadd.f32 %v1213, %v1311
        %v1344 = vadd.f32 %v1214, %v1312
        %v1345 = vadd.f32 %v1215, %v1313
        %v1346 = vadd.f32 %v1216, %v1314
        %v1347 = vld [vmem:[#allocation2] sm:$0x3]
        %v1348 = vpack.c.bf16 %v1317, %v1315
        %v1349 = vpack.c.bf16 %v1318, %v1316
        %v1350 = vpack.c.bf16 %v1321, %v1319
        %v1351 = vpack.c.bf16 %v1322, %v1320
        %v1352 = vpack.c.bf16 %v1325, %v1323
        %v1353 = vpack.c.bf16 %v1326, %v1324
        %v1354 = vpack.c.bf16 %v1329, %v1327
        %v1355 = vpack.c.bf16 %v1330, %v1328
        %v1356 = vpack.c.bf16 %v1333, %v1331
        %v1357 = vpack.c.bf16 %v1334, %v1332
        %v1358 = vpack.c.bf16 %v1337, %v1335
        %v1359 = vpack.c.bf16 %v1338, %v1336
        %v1360 = vpack.c.bf16 %v1341, %v1339
        %v1361 = vpack.c.bf16 %v1342, %v1340
        %v1362 = vpack.c.bf16 %v1345, %v1343
        %v1363 = vpack.c.bf16 %v1346, %v1344
        %1364 = vmatprep.subr.bf16.mxu0 %v1349
        %1365 = vmatpush1.bf16.msra.mxu0 %v1348
        %1366 = vmatprep.subr.bf16.mxu0 %v1351
        %1367 = vmatpush1.bf16.msra.mxu0 %v1350
        %1368 = vmatprep.subr.bf16.mxu0 %v1353
        %1369 = vmatpush1.bf16.msra.mxu0 %v1352
        %1370 = vmatprep.subr.bf16.mxu0 %v1355
        %1371 = vmatpush1.bf16.msra.mxu0 %v1354
        %1372 = vmatprep.subr.bf16.mxu0 %v1357
        %1373 = vmatpush1.bf16.msra.mxu0 %v1356
        %1374 = vmatprep.subr.bf16.mxu0 %v1359
        %1375 = vmatpush1.bf16.msra.mxu0 %v1358
        %1376 = vmatprep.subr.bf16.mxu0 %v1361
        %1377 = vmatpush1.bf16.msra.mxu0 %v1360
        %1378 = vmatprep.subr.bf16.mxu0 %v1363
        %1379 = vmatpush1.bf16.msra.mxu0 %v1362
        %1380 = vmatprep.subr.bf16.mxu0 0
        %1381 = vmatpush1.bf16.msra.mxu0 0
        %1382 = vmatprep.subr.bf16.mxu0 0
        %1383 = vmatpush1.bf16.msra.mxu0 0
        %1384 = vmatprep.subr.bf16.mxu0 0
        %1385 = vmatpush1.bf16.msra.mxu0 0
        %1386 = vmatprep.subr.bf16.mxu0 0
        %1387 = vmatpush1.bf16.msra.mxu0 0
        %1388 = vmatprep.subr.bf16.mxu0 0
        %1389 = vmatpush1.bf16.msra.mxu0 0
        %1390 = vmatprep.subr.bf16.mxu0 0
        %1391 = vmatpush1.bf16.msra.mxu0 0
        %1392 = vmatprep.subr.bf16.mxu0 0
        %1393 = vmatpush1.bf16.msra.mxu0 0
        %1394 = vmatprep.subr.bf16.mxu0 0
        %1395 = vmatpush1.bf16.msra.mxu0 0
        %1396 = vmatprep.mubr.bf16.mxu0 0
        %1397 = vmatmul.mubr.bf16.gmra.mrb[0].mxu0 %v1347
        %v1398 = vpop.f32.mrb[0].mxu0
        %v1399 = vadd.f32 0.0, %v1398
        %v1400 = vpop.f32.mrb[0].mxu0
        %v1401 = vadd.f32 0.0, %v1400
        %v1402 = vpop.f32.mrb[0].mxu0
        %v1403 = vpop.f32.mrb[0].mxu0
        %1404 = vdwg.mxu0
        %v1405 = vld [vmem:[%s270] sm:$0xff]
        %v1408 = vcombine.low %v1399, %v1401
        %v1410 = vadd.f32 %v1405, %v1408
        %1411 = vst [vmem:[%s270] sm:$0xff] %v1410
        %s1412 = sand.u32 %s132, 1
        %s1413 = scalar_lea.sflag [#allocation4], %s1412
        %s1414 = sand.u32 %s132, 1
        %s1415 = smul.addr %s1414, 8
        %s1416 = scalar_lea.vmem [#allocation8], %s1415
        // Predicated region
        $region49: #{tpu_custom_call.1} parent=31 // pred_check
          %p1417 = pneg %p142
        $region50: #{tpu_custom_call.1} parent=31 // pred_check_branch
          %1419 = sbr.rel (%p1417) target = $region52
        $region51: #{tpu_custom_call.1} parent=31 // pred_region
          %s1420 = smul.u32 2, %s27
          %s1422 = ssub.s32 128, 128
          %1423 = vsyncadd %s1413, %s1422
          %s1424 = smul.addr %s26, 2
          %s1425 = sadd.s32 %s1420, %s1424
          %s1426 = smul.addr %s1425, 64
          %s1427 = scalar_lea.hbm %s3, %s1426
          %s1429 = sshll.u32 %s1416, 4
          %s1430 = int_to_ptr.vmem [resolvable:$true] %s1429
          %1432 = dma.vmem_to_hbm [thread:$0]  %s1430, 128, %s1427, %s1413
        $region52: #{tpu_custom_call.1} parent=31 // pred_fallthru
          _
      $region32: #{tpu_custom_call.1} parent=5 // pred_fallthru
        _
      %p1433 = scmp.le.s32.totalorder 2, %s16
      // Predicated region
      $region53: #{tpu_custom_call.1} parent=5 // pred_check
        %p1434 = pneg %p1433
      $region54: #{tpu_custom_call.1} parent=5 // pred_check_branch
        %1436 = sbr.rel (%p1434) target = $region56
      $region55: #{tpu_custom_call.1} parent=5 // pred_region
        %s1437 = ssub.s32 %s16, 2
        // Predicated region
        $region57: #{tpu_custom_call.1} parent=55 // pred_check
          %p1438 = pneg %p148
        $region58: #{tpu_custom_call.1} parent=55 // pred_check_branch
          %1440 = sbr.rel (%p1438) target = $region60
        $region59: #{tpu_custom_call.1} parent=55 // pred_region
          %s1441 = sand.u32 %s133, 1
          %s1442 = scalar_lea.sflag [#allocation4], %s1441
          %s1443 = sand.u32 %s133, 1
          %s1444 = smul.addr %s1443, 8
          %s1445 = scalar_lea.vmem [#allocation8], %s1444
          %1446 = dma.done %s1442, 128
        $region60: #{tpu_custom_call.1} parent=55 // pred_fallthru
          _
      $region56: #{tpu_custom_call.1} parent=5 // pred_fallthru
        _
    $region6: #{tpu_custom_call.1} parent=1 // loop_footer
      %s20 = sadd.s32 1, %s16
    $region7: #{tpu_custom_call.1} parent=1 // loop_footer_branch
      %15 = sbr.rel target = $region3
    $region8: #{tpu_custom_call.1} parent=1 // loop_exit
      _
    %1447 = vsyncpa [#allocation3], 1
    %s1448 = scalar_lea.sflag [#allocation3], 1
    %1449 = vsyncpa %s1448, 1
    %1450 = vsyncpa [#allocation6], 1
    %s1451 = scalar_lea.sflag [#allocation6], 1
    %1452 = vsyncpa %s1451, 1
    %1453 = vsyncpa [#allocation4], 1
    %s1454 = scalar_lea.sflag [#allocation4], 1
    %1455 = vsyncpa %s1454, 1

</llo_original>
